<compile_context>
chip_gen: v6e
topology: v6e:2x2x1
jax: 0.10.0
libtpu: 0.0.40
codegen_flags: <defaults>
</compile_context>

<pallas_src>
import functools

import numpy as np
import jax
import jax.numpy as jnp
from jax import lax
from jax.experimental import pallas as pl
from jax.experimental.pallas import tpu as pltpu

# ----------------------------- config (small) -------------------------------
BATCH = 2
SEQ = 16
EMBED_DIM = 64
N_HEAD = 4
HEAD_DIM = EMBED_DIM // N_HEAD        # 16
ROTARY_DIM = 8                        # config.rotary_dim
MP_NUM = 8
MASKED_BIAS = -1000000000.0


# ------------------- one-time weight preprocessing (load time) ---------------
def preprocess_weights(w_qkv, w_out, rotary_dim=ROTARY_DIM):
    """Fold ProGen's mp_num qkv interleave, the rotary partner permutation and
    the 1/sqrt(head_dim) scale into ONE stacked (5E, E) projection matrix.

    Row blocks of the result: [ W_q/sqrt(Dh) ; W_k ; W_v ; P@W_q/sqrt(Dh) ; P@W_k ]
    where rot(x) = P @ x implements rotate_every_two (with signs) on the first
    `rotary_dim` dims of every head.  Everything here is linear, so folding it
    into the weights is exact.  MXU operands are cast to bf16 once.
    """
    w_qkv = np.asarray(w_qkv, np.float32)
    w_out = np.asarray(w_out, np.float32)
    E = EMBED_DIM
    local = E // MP_NUM

    # De-interleave mp_num-packed qkv (q, v, k order inside each group).
    w3 = w_qkv.reshape(MP_NUM, 3 * local, E)
    w_q = w3[:, :local, :].reshape(E, E)
    w_v = w3[:, local:2 * local, :].reshape(E, E)
    w_k = w3[:, 2 * local:, :].reshape(E, E)

    # Rotary partner permutation with signs: rot(x)[c] = -x[c+1] (even rotary
    # dim), +x[c-1] (odd rotary dim), 0 (pass-through dims).
    P = np.zeros((E, E), np.float32)
    for c in range(E):
        d = c % HEAD_DIM
        if d < rotary_dim:
            if d % 2 == 0:
                P[c, c + 1] = -1.0
            else:
                P[c, c - 1] = 1.0

    inv_scale = np.float32(1.0 / np.sqrt(np.float32(HEAD_DIM)))
    w_all = np.concatenate(
        [inv_scale * w_q, w_k, w_v, inv_scale * (P @ w_q), P @ w_k], axis=0)

    return (jnp.asarray(w_all, jnp.bfloat16),      # (5E, E)
            jnp.asarray(w_out, jnp.bfloat16))      # (E, E) torch (out, in)


# ----------------------- rotary masks (host constants) -----------------------
def _rotary_masks(seq_len, embed_dim, head_dim, rotary_dim):
    """(S, E) masks so in-kernel rotary is q*cos + rot(q)*sin (pure VPU)."""
    pos = np.arange(seq_len, dtype=np.float32)
    inv_freq = 1.0 / (10000.0 ** (np.arange(0, rotary_dim, 2, dtype=np.float32)
                                  / rotary_dim))
    sinusoid = np.outer(pos, inv_freq)                  # (S, rotary_dim // 2)
    sin, cos = np.sin(sinusoid), np.cos(sinusoid)

    cos_m = np.ones((seq_len, embed_dim), np.float32)
    sin_m = np.zeros((seq_len, embed_dim), np.float32)
    for c in range(embed_dim):
        d = c % head_dim
        if d < rotary_dim:
            cos_m[:, c] = cos[:, d // 2]
            sin_m[:, c] = sin[:, d // 2]
    return cos_m, sin_m


# ------------------------------ fused kernel ---------------------------------
def _progen_fused_kernel(x_ref, w_all_ref, wo_ref, cos_ref, sin_ref, o_ref,
                         *, n_head, head_dim, seq, n_batch):
    E = n_head * head_dim
    x = x_ref[...].astype(jnp.bfloat16)                 # (rows, E) MXU operand

    # ONE fused projection matmul -> [q | k | v | rot(q) | rot(k)]  (rows, 5E).
    # (q rows were pre-scaled by 1/sqrt(head_dim) at weight-load time.)
    qkv5 = lax.dot_general(x, w_all_ref[...], (((1,), (1,)), ((), ())),
                           preferred_element_type=jnp.float32)

    cos_m = cos_ref[...]                                # (rows, E) f32
    sin_m = sin_ref[...]

    # Rotary embedding: the partner gather was folded into the projection, so
    # this is pure elementwise f32 VPU work.
    q = qkv5[:, 0 * E:1 * E] * cos_m + qkv5[:, 3 * E:4 * E] * sin_m
    k = qkv5[:, 1 * E:2 * E] * cos_m + qkv5[:, 4 * E:5 * E] * sin_m
    v = qkv5[:, 2 * E:3 * E]

    # bf16 MXU operands for the attention matmuls (f32 accumulation below).
    q = q.astype(jnp.bfloat16)
    k = k.astype(jnp.bfloat16)
    v = v.astype(jnp.bfloat16)

    # Causal mask built once, shared by every (batch, head).
    row = lax.broadcasted_iota(jnp.int32, (seq, seq), 0)
    col = lax.broadcasted_iota(jnp.int32, (seq, seq), 1)
    causal = col <= row

    merged_rows = []
    for b in range(n_batch):                            # batches folded in rows
        rsl = slice(b * seq, (b + 1) * seq)
        heads = []
        for h in range(n_head):
            csl = slice(h * head_dim, (h + 1) * head_dim)
            qh, kh, vh = q[rsl, csl], k[rsl, csl], v[rsl, csl]   # (S, Dh)

            s = lax.dot_general(qh, kh, (((1,), (1,)), ((), ())),
                                preferred_element_type=jnp.float32)  # (S, S)
            s = jnp.where(causal, s, jnp.float32(MASKED_BIAS))

            p = jnp.exp(s - jnp.max(s, axis=-1, keepdims=True))       # f32
            attn = p * pl.reciprocal(jnp.sum(p, axis=-1, keepdims=True),
                                     approx=True)

            oh = jnp.dot(attn.astype(jnp.bfloat16), vh,
                         preferred_element_type=jnp.float32)           # (S, Dh)
            heads.append(oh)
        merged_rows.append(jnp.concatenate(heads, axis=1))             # (S, E)

    merged = jnp.concatenate(merged_rows, axis=0)                      # (rows, E)

    # Fused head-merge + output projection: one K=E matmul.
    out = lax.dot_general(merged.astype(jnp.bfloat16), wo_ref[...],
                          (((1,), (1,)), ((), ())),
                          preferred_element_type=jnp.float32)
    o_ref[...] = out.astype(o_ref.dtype)


# ------------------------------ forward pass --------------------------------
def _default_batch_per_block(batch):
    # v7x has 2 TensorCores per chip: keep one batch per grid step so the
    # "parallel" grid axis shards across cores.  v5e/v6e are single-TC: fold
    # the whole batch into one grid step (no per-step overhead, fuller MXU).
    try:
        kind = jax.devices()[0].device_kind.lower()
    except Exception:
        kind = ""
    return 1 if "v7" in kind else batch


def progen_attention_forward(hidden_states, w_all, w_out_p, batch_per_block=None):
    B, S, E = hidden_states.shape
    bpb = _default_batch_per_block(B) if batch_per_block is None else batch_per_block
    assert B % bpb == 0
    rows = bpb * S

    cos_m, sin_m = _rotary_masks(S, E, HEAD_DIM, ROTARY_DIM)
    cos_t = jnp.asarray(np.tile(cos_m, (bpb, 1)))       # (rows, E)
    sin_t = jnp.asarray(np.tile(sin_m, (bpb, 1)))

    x2d = hidden_states.reshape(B * S, E)               # fold batch into rows

    kernel = functools.partial(_progen_fused_kernel, n_head=N_HEAD,
                               head_dim=HEAD_DIM, seq=S, n_batch=bpb)

    out = pl.pallas_call(
        kernel,
        out_shape=jax.ShapeDtypeStruct((B * S, E), jnp.float32),
        grid=(B // bpb,),
        in_specs=[
            pl.BlockSpec((rows, E), lambda b: (b, 0)),          # hidden rows
            pl.BlockSpec(w_all.shape, lambda b: (0, 0)),        # (5E, E) bf16
            pl.BlockSpec(w_out_p.shape, lambda b: (0, 0)),      # (E, E) bf16
            pl.BlockSpec((rows, E), lambda b: (0, 0)),          # cos mask
            pl.BlockSpec((rows, E), lambda b: (0, 0)),          # sin mask
        ],
        out_specs=pl.BlockSpec((rows, E), lambda b: (b, 0)),
        compiler_params=pltpu.CompilerParams(
            dimension_semantics=("parallel",)),
    )(x2d, w_all, w_out_p, cos_t, sin_t)
    # TODO(synk): layer_past / use_cache (KV cache concat), attention_mask,
    # head_mask and output_attentions are not implemented (default-None path);
    # attn/resid dropout are identity in eval mode.
    return out.reshape(B, S, E)


# --------------------------- pure-JAX reference ------------------------------
def reference_forward(hidden_states, w_qkv, w_out, rotary_dim=ROTARY_DIM):
    """Direct transcription of the PyTorch module (independent of the kernel)."""
    B, S, E = hidden_states.shape
    H, Dh = N_HEAD, HEAD_DIM
    local = E // MP_NUM

    qkv = jnp.einsum('bse,fe->bsf', hidden_states, w_qkv)         # (B,S,3E)
    qkv_split = qkv.reshape(B, S, MP_NUM, 3 * local)
    query = qkv_split[..., :local]
    value = qkv_split[..., local:2 * local]
    key = qkv_split[..., 2 * local:]

    def split_heads(x):
        return x.reshape(B, S, E).reshape(B, S, H, Dh)

    query, key, value = split_heads(query), split_heads(key), split_heads(value)
    value = value.transpose(0, 2, 1, 3)                           # (B,H,S,Dh)

    inv_freq = 1.0 / (10000.0 ** (jnp.arange(0, rotary_dim, 2, dtype=jnp.float32)
                                  / rotary_dim))
    sinusoid = jnp.einsum('i,j->ij', jnp.arange(S, dtype=jnp.float32), inv_freq)
    sin, cos = jnp.sin(sinusoid), jnp.cos(sinusoid)

    def rot_every_two(x):
        x1 = x[..., ::2]
        x2 = x[..., 1::2]
        return jnp.stack([-x2, x1], axis=-1).reshape(x.shape)

    def apply_rope(x):
        s = jnp.repeat(sin[None, :, None, :], 2, axis=3)
        c = jnp.repeat(cos[None, :, None, :], 2, axis=3)
        return x * c + rot_every_two(x) * s

    q_rot = apply_rope(query[..., :rotary_dim])
    k_rot = apply_rope(key[..., :rotary_dim])
    query = jnp.concatenate([q_rot, query[..., rotary_dim:]], axis=-1)
    key = jnp.concatenate([k_rot, key[..., rotary_dim:]], axis=-1)
    query = query.transpose(0, 2, 1, 3)                           # (B,H,S,Dh)
    key = key.transpose(0, 2, 1, 3)

    scale = jnp.sqrt(jnp.float32(Dh))
    s = jnp.einsum('bhqd,bhkd->bhqk', query, key,
                   preferred_element_type=jnp.float32) / scale
    causal = jnp.tril(jnp.ones((S, S), bool))
    s = jnp.where(causal[None, None], s, jnp.float32(MASKED_BIAS))
    w = jax.nn.softmax(s, axis=-1)
    attn = jnp.einsum('bhqk,bhkd->bhqd', w, value,
                      preferred_element_type=jnp.float32)
    attn = attn.transpose(0, 2, 1, 3).reshape(B, S, E)
    return jnp.einsum('bse,fe->bsf', attn, w_out)


# ----------------------------------- main ------------------------------------
if __name__ == "__main__":
    key0 = jax.random.PRNGKey(0)
    kx, kq, ko = jax.random.split(key0, 3)

    hidden_states = jax.random.normal(kx, (BATCH, SEQ, EMBED_DIM), dtype=jnp.float32)
    # torch nn.Linear weight layout: (out_features, in_features), no bias.
    w_qkv = 0.02 * jax.random.normal(kq, (3 * EMBED_DIM, EMBED_DIM), dtype=jnp.float32)
    w_out = 0.02 * jax.random.normal(ko, (EMBED_DIM, EMBED_DIM), dtype=jnp.float32)

    # One-time weight-load-time preprocessing (hoisted out of the call path).
    w_all, w_out_p = preprocess_weights(w_qkv, w_out)

    out = progen_attention_forward(hidden_states, w_all, w_out_p)
    jax.block_until_ready(out)

    ref = reference_forward(hidden_states, w_qkv, w_out)
    max_err = float(jnp.max(jnp.abs(out - ref)))
    if max_err < 5e-2:
        print("KERNEL_OK")
    else:
        print(f"MISMATCH max_abs_err={max_err}")
</pallas_src>

<mosaic_0001>
module attributes {stable_mosaic.version = 11 : i64} {
  func.func @_progen_fused_kernel(%arg0: i32, %arg1: memref<32x64xf32, #tpu.memory_space<vmem>>, %arg2: memref<320x64xbf16, #tpu.memory_space<vmem>>, %arg3: memref<64x64xbf16, #tpu.memory_space<vmem>>, %arg4: memref<32x64xf32, #tpu.memory_space<vmem>>, %arg5: memref<32x64xf32, #tpu.memory_space<vmem>>, %arg6: memref<32x64xf32, #tpu.memory_space<vmem>>) attributes {dimension_semantics = [#tpu.dimension_semantics<parallel>], iteration_bounds = array<i64: 1>, scalar_prefetch = 0 : i64, scratch_operands = 0 : i64, tpu.core_type = #tpu.core_type<tc>, window_params = [{transform_indices = @transform_0, window_bounds = array<i64: 32, 64>}, {pipeline_mode = #tpu.pipeline_mode<synchronous>, transform_indices = @transform_1, window_bounds = array<i64: 320, 64>}, {pipeline_mode = #tpu.pipeline_mode<synchronous>, transform_indices = @transform_2, window_bounds = array<i64: 64, 64>}, {pipeline_mode = #tpu.pipeline_mode<synchronous>, transform_indices = @transform_3, window_bounds = array<i64: 32, 64>}, {pipeline_mode = #tpu.pipeline_mode<synchronous>, transform_indices = @transform_4, window_bounds = array<i64: 32, 64>}, {transform_indices = @transform_5, window_bounds = array<i64: 32, 64>}]} {
    %c0 = arith.constant 0 : index
    %c0_0 = arith.constant 0 : index
    %0 = vector.load %arg1[%c0, %c0_0] : memref<32x64xf32, #tpu.memory_space<vmem>>, vector<32x64xf32>
    %1 = arith.truncf %0 : vector<32x64xf32> to vector<32x64xbf16>
    %c0_1 = arith.constant 0 : index
    %c0_2 = arith.constant 0 : index
    %2 = vector.load %arg2[%c0_1, %c0_2] : memref<320x64xbf16, #tpu.memory_space<vmem>>, vector<320x64xbf16>
    %cst = arith.constant dense<0.000000e+00> : vector<32x320xf32>
    %3 = tpu.matmul %1, %2, %cst {dimension_numbers = #tpu.dot_dimension_numbers<[1], [1], [0], [0], [0, 0, 1, 0], [], []>} : vector<32x64xbf16>, vector<320x64xbf16>, vector<32x320xf32> -> vector<32x320xf32>
    %c0_3 = arith.constant 0 : index
    %c0_4 = arith.constant 0 : index
    %4 = vector.load %arg4[%c0_3, %c0_4] : memref<32x64xf32, #tpu.memory_space<vmem>>, vector<32x64xf32>
    %c0_5 = arith.constant 0 : index
    %c0_6 = arith.constant 0 : index
    %5 = vector.load %arg5[%c0_5, %c0_6] : memref<32x64xf32, #tpu.memory_space<vmem>>, vector<32x64xf32>
    %6 = vector.extract_strided_slice %3 {offsets = [0, 0], sizes = [32, 64], strides = [1, 1]} : vector<32x320xf32> to vector<32x64xf32>
    %7 = arith.mulf %6, %4 : vector<32x64xf32>
    %8 = vector.extract_strided_slice %3 {offsets = [0, 192], sizes = [32, 64], strides = [1, 1]} : vector<32x320xf32> to vector<32x64xf32>
    %9 = arith.mulf %8, %5 : vector<32x64xf32>
    %10 = arith.addf %7, %9 : vector<32x64xf32>
    %11 = vector.extract_strided_slice %3 {offsets = [0, 64], sizes = [32, 64], strides = [1, 1]} : vector<32x320xf32> to vector<32x64xf32>
    %12 = arith.mulf %11, %4 : vector<32x64xf32>
    %13 = vector.extract_strided_slice %3 {offsets = [0, 256], sizes = [32, 64], strides = [1, 1]} : vector<32x320xf32> to vector<32x64xf32>
    %14 = arith.mulf %13, %5 : vector<32x64xf32>
    %15 = arith.addf %12, %14 : vector<32x64xf32>
    %16 = vector.extract_strided_slice %3 {offsets = [0, 128], sizes = [32, 64], strides = [1, 1]} : vector<32x320xf32> to vector<32x64xf32>
    %17 = arith.truncf %10 : vector<32x64xf32> to vector<32x64xbf16>
    %18 = arith.truncf %15 : vector<32x64xf32> to vector<32x64xbf16>
    %19 = arith.truncf %16 : vector<32x64xf32> to vector<32x64xbf16>
    %20 = tpu.iota {dimensions = array<i32: 0>} : vector<16x16xi32>
    %21 = tpu.iota {dimensions = array<i32: 1>} : vector<16x16xi32>
    %22 = arith.cmpi sle, %21, %20 : vector<16x16xi32>
    %23 = vector.extract_strided_slice %17 {offsets = [0, 0], sizes = [16, 16], strides = [1, 1]} : vector<32x64xbf16> to vector<16x16xbf16>
    %24 = vector.extract_strided_slice %18 {offsets = [0, 0], sizes = [16, 16], strides = [1, 1]} : vector<32x64xbf16> to vector<16x16xbf16>
    %25 = vector.extract_strided_slice %19 {offsets = [0, 0], sizes = [16, 16], strides = [1, 1]} : vector<32x64xbf16> to vector<16x16xbf16>
    %cst_7 = arith.constant dense<0.000000e+00> : vector<16x16xf32>
    %26 = tpu.matmul %23, %24, %cst_7 {dimension_numbers = #tpu.dot_dimension_numbers<[1], [1], [0], [0], [0, 0, 1, 0], [], []>} : vector<16x16xbf16>, vector<16x16xbf16>, vector<16x16xf32> -> vector<16x16xf32>
    %cst_8 = arith.constant -1.000000e+09 : f32
    %27 = vector.broadcast %cst_8 : f32 to vector<16x16xf32>
    %28 = arith.select %22, %26, %27 : vector<16x16xi1>, vector<16x16xf32>
    %cst_9 = arith.constant dense<0xFF800000> : vector<16xf32>
    %29 = vector.multi_reduction <maximumf>, %28, %cst_9 [1] : vector<16x16xf32> to vector<16xf32>
    %30 = vector.shape_cast %29 : vector<16xf32> to vector<16x1xf32>
    %31 = vector.broadcast %30 : vector<16x1xf32> to vector<16x16xf32>
    %32 = arith.subf %28, %31 : vector<16x16xf32>
    %33 = math.exp %32 : vector<16x16xf32>
    %cst_10 = arith.constant dense<0.000000e+00> : vector<16xf32>
    %34 = vector.multi_reduction <add>, %33, %cst_10 [1] : vector<16x16xf32> to vector<16xf32>
    %35 = vector.shape_cast %34 : vector<16xf32> to vector<16x1xf32>
    %36 = tpu.reciprocal %35 {approx = true} : vector<16x1xf32> -> vector<16x1xf32>
    %37 = vector.broadcast %36 : vector<16x1xf32> to vector<16x16xf32>
    %38 = arith.mulf %33, %37 : vector<16x16xf32>
    %39 = arith.truncf %38 : vector<16x16xf32> to vector<16x16xbf16>
    %cst_11 = arith.constant dense<0.000000e+00> : vector<16x16xf32>
    %40 = tpu.matmul %39, %25, %cst_11 {dimension_numbers = #tpu.dot_dimension_numbers<[1], [0], [0], [1], [0, 0, 1, 1], [], []>} : vector<16x16xbf16>, vector<16x16xbf16>, vector<16x16xf32> -> vector<16x16xf32>
    %41 = vector.extract_strided_slice %17 {offsets = [0, 16], sizes = [16, 16], strides = [1, 1]} : vector<32x64xbf16> to vector<16x16xbf16>
    %42 = vector.extract_strided_slice %18 {offsets = [0, 16], sizes = [16, 16], strides = [1, 1]} : vector<32x64xbf16> to vector<16x16xbf16>
    %43 = vector.extract_strided_slice %19 {offsets = [0, 16], sizes = [16, 16], strides = [1, 1]} : vector<32x64xbf16> to vector<16x16xbf16>
    %cst_12 = arith.constant dense<0.000000e+00> : vector<16x16xf32>
    %44 = tpu.matmul %41, %42, %cst_12 {dimension_numbers = #tpu.dot_dimension_numbers<[1], [1], [0], [0], [0, 0, 1, 0], [], []>} : vector<16x16xbf16>, vector<16x16xbf16>, vector<16x16xf32> -> vector<16x16xf32>
    %cst_13 = arith.constant -1.000000e+09 : f32
    %45 = vector.broadcast %cst_13 : f32 to vector<16x16xf32>
    %46 = arith.select %22, %44, %45 : vector<16x16xi1>, vector<16x16xf32>
    %cst_14 = arith.constant dense<0xFF800000> : vector<16xf32>
    %47 = vector.multi_reduction <maximumf>, %46, %cst_14 [1] : vector<16x16xf32> to vector<16xf32>
    %48 = vector.shape_cast %47 : vector<16xf32> to vector<16x1xf32>
    %49 = vector.broadcast %48 : vector<16x1xf32> to vector<16x16xf32>
    %50 = arith.subf %46, %49 : vector<16x16xf32>
    %51 = math.exp %50 : vector<16x16xf32>
    %cst_15 = arith.constant dense<0.000000e+00> : vector<16xf32>
    %52 = vector.multi_reduction <add>, %51, %cst_15 [1] : vector<16x16xf32> to vector<16xf32>
    %53 = vector.shape_cast %52 : vector<16xf32> to vector<16x1xf32>
    %54 = tpu.reciprocal %53 {approx = true} : vector<16x1xf32> -> vector<16x1xf32>
    %55 = vector.broadcast %54 : vector<16x1xf32> to vector<16x16xf32>
    %56 = arith.mulf %51, %55 : vector<16x16xf32>
    %57 = arith.truncf %56 : vector<16x16xf32> to vector<16x16xbf16>
    %cst_16 = arith.constant dense<0.000000e+00> : vector<16x16xf32>
    %58 = tpu.matmul %57, %43, %cst_16 {dimension_numbers = #tpu.dot_dimension_numbers<[1], [0], [0], [1], [0, 0, 1, 1], [], []>} : vector<16x16xbf16>, vector<16x16xbf16>, vector<16x16xf32> -> vector<16x16xf32>
    %59 = vector.extract_strided_slice %17 {offsets = [0, 32], sizes = [16, 16], strides = [1, 1]} : vector<32x64xbf16> to vector<16x16xbf16>
    %60 = vector.extract_strided_slice %18 {offsets = [0, 32], sizes = [16, 16], strides = [1, 1]} : vector<32x64xbf16> to vector<16x16xbf16>
    %61 = vector.extract_strided_slice %19 {offsets = [0, 32], sizes = [16, 16], strides = [1, 1]} : vector<32x64xbf16> to vector<16x16xbf16>
    %cst_17 = arith.constant dense<0.000000e+00> : vector<16x16xf32>
    %62 = tpu.matmul %59, %60, %cst_17 {dimension_numbers = #tpu.dot_dimension_numbers<[1], [1], [0], [0], [0, 0, 1, 0], [], []>} : vector<16x16xbf16>, vector<16x16xbf16>, vector<16x16xf32> -> vector<16x16xf32>
    %cst_18 = arith.constant -1.000000e+09 : f32
    %63 = vector.broadcast %cst_18 : f32 to vector<16x16xf32>
    %64 = arith.select %22, %62, %63 : vector<16x16xi1>, vector<16x16xf32>
    %cst_19 = arith.constant dense<0xFF800000> : vector<16xf32>
    %65 = vector.multi_reduction <maximumf>, %64, %cst_19 [1] : vector<16x16xf32> to vector<16xf32>
    %66 = vector.shape_cast %65 : vector<16xf32> to vector<16x1xf32>
    %67 = vector.broadcast %66 : vector<16x1xf32> to vector<16x16xf32>
    %68 = arith.subf %64, %67 : vector<16x16xf32>
    %69 = math.exp %68 : vector<16x16xf32>
    %cst_20 = arith.constant dense<0.000000e+00> : vector<16xf32>
    %70 = vector.multi_reduction <add>, %69, %cst_20 [1] : vector<16x16xf32> to vector<16xf32>
    %71 = vector.shape_cast %70 : vector<16xf32> to vector<16x1xf32>
    %72 = tpu.reciprocal %71 {approx = true} : vector<16x1xf32> -> vector<16x1xf32>
    %73 = vector.broadcast %72 : vector<16x1xf32> to vector<16x16xf32>
    %74 = arith.mulf %69, %73 : vector<16x16xf32>
    %75 = arith.truncf %74 : vector<16x16xf32> to vector<16x16xbf16>
    %cst_21 = arith.constant dense<0.000000e+00> : vector<16x16xf32>
    %76 = tpu.matmul %75, %61, %cst_21 {dimension_numbers = #tpu.dot_dimension_numbers<[1], [0], [0], [1], [0, 0, 1, 1], [], []>} : vector<16x16xbf16>, vector<16x16xbf16>, vector<16x16xf32> -> vector<16x16xf32>
    %77 = vector.extract_strided_slice %17 {offsets = [0, 48], sizes = [16, 16], strides = [1, 1]} : vector<32x64xbf16> to vector<16x16xbf16>
    %78 = vector.extract_strided_slice %18 {offsets = [0, 48], sizes = [16, 16], strides = [1, 1]} : vector<32x64xbf16> to vector<16x16xbf16>
    %79 = vector.extract_strided_slice %19 {offsets = [0, 48], sizes = [16, 16], strides = [1, 1]} : vector<32x64xbf16> to vector<16x16xbf16>
    %cst_22 = arith.constant dense<0.000000e+00> : vector<16x16xf32>
    %80 = tpu.matmul %77, %78, %cst_22 {dimension_numbers = #tpu.dot_dimension_numbers<[1], [1], [0], [0], [0, 0, 1, 0], [], []>} : vector<16x16xbf16>, vector<16x16xbf16>, vector<16x16xf32> -> vector<16x16xf32>
    %cst_23 = arith.constant -1.000000e+09 : f32
    %81 = vector.broadcast %cst_23 : f32 to vector<16x16xf32>
    %82 = arith.select %22, %80, %81 : vector<16x16xi1>, vector<16x16xf32>
    %cst_24 = arith.constant dense<0xFF800000> : vector<16xf32>
    %83 = vector.multi_reduction <maximumf>, %82, %cst_24 [1] : vector<16x16xf32> to vector<16xf32>
    %84 = vector.shape_cast %83 : vector<16xf32> to vector<16x1xf32>
    %85 = vector.broadcast %84 : vector<16x1xf32> to vector<16x16xf32>
    %86 = arith.subf %82, %85 : vector<16x16xf32>
    %87 = math.exp %86 : vector<16x16xf32>
    %cst_25 = arith.constant dense<0.000000e+00> : vector<16xf32>
    %88 = vector.multi_reduction <add>, %87, %cst_25 [1] : vector<16x16xf32> to vector<16xf32>
    %89 = vector.shape_cast %88 : vector<16xf32> to vector<16x1xf32>
    %90 = tpu.reciprocal %89 {approx = true} : vector<16x1xf32> -> vector<16x1xf32>
    %91 = vector.broadcast %90 : vector<16x1xf32> to vector<16x16xf32>
    %92 = arith.mulf %87, %91 : vector<16x16xf32>
    %93 = arith.truncf %92 : vector<16x16xf32> to vector<16x16xbf16>
    %cst_26 = arith.constant dense<0.000000e+00> : vector<16x16xf32>
    %94 = tpu.matmul %93, %79, %cst_26 {dimension_numbers = #tpu.dot_dimension_numbers<[1], [0], [0], [1], [0, 0, 1, 1], [], []>} : vector<16x16xbf16>, vector<16x16xbf16>, vector<16x16xf32> -> vector<16x16xf32>
    %95 = tpu.concatenate %40, %58, %76, %94 in 1 : vector<16x16xf32>, vector<16x16xf32>, vector<16x16xf32>, vector<16x16xf32> -> vector<16x64xf32>
    %96 = vector.extract_strided_slice %17 {offsets = [16, 0], sizes = [16, 16], strides = [1, 1]} : vector<32x64xbf16> to vector<16x16xbf16>
    %97 = vector.extract_strided_slice %18 {offsets = [16, 0], sizes = [16, 16], strides = [1, 1]} : vector<32x64xbf16> to vector<16x16xbf16>
    %98 = vector.extract_strided_slice %19 {offsets = [16, 0], sizes = [16, 16], strides = [1, 1]} : vector<32x64xbf16> to vector<16x16xbf16>
    %cst_27 = arith.constant dense<0.000000e+00> : vector<16x16xf32>
    %99 = tpu.matmul %96, %97, %cst_27 {dimension_numbers = #tpu.dot_dimension_numbers<[1], [1], [0], [0], [0, 0, 1, 0], [], []>} : vector<16x16xbf16>, vector<16x16xbf16>, vector<16x16xf32> -> vector<16x16xf32>
    %cst_28 = arith.constant -1.000000e+09 : f32
    %100 = vector.broadcast %cst_28 : f32 to vector<16x16xf32>
    %101 = arith.select %22, %99, %100 : vector<16x16xi1>, vector<16x16xf32>
    %cst_29 = arith.constant dense<0xFF800000> : vector<16xf32>
    %102 = vector.multi_reduction <maximumf>, %101, %cst_29 [1] : vector<16x16xf32> to vector<16xf32>
    %103 = vector.shape_cast %102 : vector<16xf32> to vector<16x1xf32>
    %104 = vector.broadcast %103 : vector<16x1xf32> to vector<16x16xf32>
    %105 = arith.subf %101, %104 : vector<16x16xf32>
    %106 = math.exp %105 : vector<16x16xf32>
    %cst_30 = arith.constant dense<0.000000e+00> : vector<16xf32>
    %107 = vector.multi_reduction <add>, %106, %cst_30 [1] : vector<16x16xf32> to vector<16xf32>
    %108 = vector.shape_cast %107 : vector<16xf32> to vector<16x1xf32>
    %109 = tpu.reciprocal %108 {approx = true} : vector<16x1xf32> -> vector<16x1xf32>
    %110 = vector.broadcast %109 : vector<16x1xf32> to vector<16x16xf32>
    %111 = arith.mulf %106, %110 : vector<16x16xf32>
    %112 = arith.truncf %111 : vector<16x16xf32> to vector<16x16xbf16>
    %cst_31 = arith.constant dense<0.000000e+00> : vector<16x16xf32>
    %113 = tpu.matmul %112, %98, %cst_31 {dimension_numbers = #tpu.dot_dimension_numbers<[1], [0], [0], [1], [0, 0, 1, 1], [], []>} : vector<16x16xbf16>, vector<16x16xbf16>, vector<16x16xf32> -> vector<16x16xf32>
    %114 = vector.extract_strided_slice %17 {offsets = [16, 16], sizes = [16, 16], strides = [1, 1]} : vector<32x64xbf16> to vector<16x16xbf16>
    %115 = vector.extract_strided_slice %18 {offsets = [16, 16], sizes = [16, 16], strides = [1, 1]} : vector<32x64xbf16> to vector<16x16xbf16>
    %116 = vector.extract_strided_slice %19 {offsets = [16, 16], sizes = [16, 16], strides = [1, 1]} : vector<32x64xbf16> to vector<16x16xbf16>
    %cst_32 = arith.constant dense<0.000000e+00> : vector<16x16xf32>
    %117 = tpu.matmul %114, %115, %cst_32 {dimension_numbers = #tpu.dot_dimension_numbers<[1], [1], [0], [0], [0, 0, 1, 0], [], []>} : vector<16x16xbf16>, vector<16x16xbf16>, vector<16x16xf32> -> vector<16x16xf32>
    %cst_33 = arith.constant -1.000000e+09 : f32
    %118 = vector.broadcast %cst_33 : f32 to vector<16x16xf32>
    %119 = arith.select %22, %117, %118 : vector<16x16xi1>, vector<16x16xf32>
    %cst_34 = arith.constant dense<0xFF800000> : vector<16xf32>
    %120 = vector.multi_reduction <maximumf>, %119, %cst_34 [1] : vector<16x16xf32> to vector<16xf32>
    %121 = vector.shape_cast %120 : vector<16xf32> to vector<16x1xf32>
    %122 = vector.broadcast %121 : vector<16x1xf32> to vector<16x16xf32>
    %123 = arith.subf %119, %122 : vector<16x16xf32>
    %124 = math.exp %123 : vector<16x16xf32>
    %cst_35 = arith.constant dense<0.000000e+00> : vector<16xf32>
    %125 = vector.multi_reduction <add>, %124, %cst_35 [1] : vector<16x16xf32> to vector<16xf32>
    %126 = vector.shape_cast %125 : vector<16xf32> to vector<16x1xf32>
    %127 = tpu.reciprocal %126 {approx = true} : vector<16x1xf32> -> vector<16x1xf32>
    %128 = vector.broadcast %127 : vector<16x1xf32> to vector<16x16xf32>
    %129 = arith.mulf %124, %128 : vector<16x16xf32>
    %130 = arith.truncf %129 : vector<16x16xf32> to vector<16x16xbf16>
    %cst_36 = arith.constant dense<0.000000e+00> : vector<16x16xf32>
    %131 = tpu.matmul %130, %116, %cst_36 {dimension_numbers = #tpu.dot_dimension_numbers<[1], [0], [0], [1], [0, 0, 1, 1], [], []>} : vector<16x16xbf16>, vector<16x16xbf16>, vector<16x16xf32> -> vector<16x16xf32>
    %132 = vector.extract_strided_slice %17 {offsets = [16, 32], sizes = [16, 16], strides = [1, 1]} : vector<32x64xbf16> to vector<16x16xbf16>
    %133 = vector.extract_strided_slice %18 {offsets = [16, 32], sizes = [16, 16], strides = [1, 1]} : vector<32x64xbf16> to vector<16x16xbf16>
    %134 = vector.extract_strided_slice %19 {offsets = [16, 32], sizes = [16, 16], strides = [1, 1]} : vector<32x64xbf16> to vector<16x16xbf16>
    %cst_37 = arith.constant dense<0.000000e+00> : vector<16x16xf32>
    %135 = tpu.matmul %132, %133, %cst_37 {dimension_numbers = #tpu.dot_dimension_numbers<[1], [1], [0], [0], [0, 0, 1, 0], [], []>} : vector<16x16xbf16>, vector<16x16xbf16>, vector<16x16xf32> -> vector<16x16xf32>
    %cst_38 = arith.constant -1.000000e+09 : f32
    %136 = vector.broadcast %cst_38 : f32 to vector<16x16xf32>
    %137 = arith.select %22, %135, %136 : vector<16x16xi1>, vector<16x16xf32>
    %cst_39 = arith.constant dense<0xFF800000> : vector<16xf32>
    %138 = vector.multi_reduction <maximumf>, %137, %cst_39 [1] : vector<16x16xf32> to vector<16xf32>
    %139 = vector.shape_cast %138 : vector<16xf32> to vector<16x1xf32>
    %140 = vector.broadcast %139 : vector<16x1xf32> to vector<16x16xf32>
    %141 = arith.subf %137, %140 : vector<16x16xf32>
    %142 = math.exp %141 : vector<16x16xf32>
    %cst_40 = arith.constant dense<0.000000e+00> : vector<16xf32>
    %143 = vector.multi_reduction <add>, %142, %cst_40 [1] : vector<16x16xf32> to vector<16xf32>
    %144 = vector.shape_cast %143 : vector<16xf32> to vector<16x1xf32>
    %145 = tpu.reciprocal %144 {approx = true} : vector<16x1xf32> -> vector<16x1xf32>
    %146 = vector.broadcast %145 : vector<16x1xf32> to vector<16x16xf32>
    %147 = arith.mulf %142, %146 : vector<16x16xf32>
    %148 = arith.truncf %147 : vector<16x16xf32> to vector<16x16xbf16>
    %cst_41 = arith.constant dense<0.000000e+00> : vector<16x16xf32>
    %149 = tpu.matmul %148, %134, %cst_41 {dimension_numbers = #tpu.dot_dimension_numbers<[1], [0], [0], [1], [0, 0, 1, 1], [], []>} : vector<16x16xbf16>, vector<16x16xbf16>, vector<16x16xf32> -> vector<16x16xf32>
    %150 = vector.extract_strided_slice %17 {offsets = [16, 48], sizes = [16, 16], strides = [1, 1]} : vector<32x64xbf16> to vector<16x16xbf16>
    %151 = vector.extract_strided_slice %18 {offsets = [16, 48], sizes = [16, 16], strides = [1, 1]} : vector<32x64xbf16> to vector<16x16xbf16>
    %152 = vector.extract_strided_slice %19 {offsets = [16, 48], sizes = [16, 16], strides = [1, 1]} : vector<32x64xbf16> to vector<16x16xbf16>
    %cst_42 = arith.constant dense<0.000000e+00> : vector<16x16xf32>
    %153 = tpu.matmul %150, %151, %cst_42 {dimension_numbers = #tpu.dot_dimension_numbers<[1], [1], [0], [0], [0, 0, 1, 0], [], []>} : vector<16x16xbf16>, vector<16x16xbf16>, vector<16x16xf32> -> vector<16x16xf32>
    %cst_43 = arith.constant -1.000000e+09 : f32
    %154 = vector.broadcast %cst_43 : f32 to vector<16x16xf32>
    %155 = arith.select %22, %153, %154 : vector<16x16xi1>, vector<16x16xf32>
    %cst_44 = arith.constant dense<0xFF800000> : vector<16xf32>
    %156 = vector.multi_reduction <maximumf>, %155, %cst_44 [1] : vector<16x16xf32> to vector<16xf32>
    %157 = vector.shape_cast %156 : vector<16xf32> to vector<16x1xf32>
    %158 = vector.broadcast %157 : vector<16x1xf32> to vector<16x16xf32>
    %159 = arith.subf %155, %158 : vector<16x16xf32>
    %160 = math.exp %159 : vector<16x16xf32>
    %cst_45 = arith.constant dense<0.000000e+00> : vector<16xf32>
    %161 = vector.multi_reduction <add>, %160, %cst_45 [1] : vector<16x16xf32> to vector<16xf32>
    %162 = vector.shape_cast %161 : vector<16xf32> to vector<16x1xf32>
    %163 = tpu.reciprocal %162 {approx = true} : vector<16x1xf32> -> vector<16x1xf32>
    %164 = vector.broadcast %163 : vector<16x1xf32> to vector<16x16xf32>
    %165 = arith.mulf %160, %164 : vector<16x16xf32>
    %166 = arith.truncf %165 : vector<16x16xf32> to vector<16x16xbf16>
    %cst_46 = arith.constant dense<0.000000e+00> : vector<16x16xf32>
    %167 = tpu.matmul %166, %152, %cst_46 {dimension_numbers = #tpu.dot_dimension_numbers<[1], [0], [0], [1], [0, 0, 1, 1], [], []>} : vector<16x16xbf16>, vector<16x16xbf16>, vector<16x16xf32> -> vector<16x16xf32>
    %168 = tpu.concatenate %113, %131, %149, %167 in 1 : vector<16x16xf32>, vector<16x16xf32>, vector<16x16xf32>, vector<16x16xf32> -> vector<16x64xf32>
    %169 = tpu.concatenate %95, %168 in 0 : vector<16x64xf32>, vector<16x64xf32> -> vector<32x64xf32>
    %170 = arith.truncf %169 : vector<32x64xf32> to vector<32x64xbf16>
    %c0_47 = arith.constant 0 : index
    %c0_48 = arith.constant 0 : index
    %171 = vector.load %arg3[%c0_47, %c0_48] : memref<64x64xbf16, #tpu.memory_space<vmem>>, vector<64x64xbf16>
    %cst_49 = arith.constant dense<0.000000e+00> : vector<32x64xf32>
    %172 = tpu.matmul %170, %171, %cst_49 {dimension_numbers = #tpu.dot_dimension_numbers<[1], [1], [0], [0], [0, 0, 1, 0], [], []>} : vector<32x64xbf16>, vector<64x64xbf16>, vector<32x64xf32> -> vector<32x64xf32>
    %c0_50 = arith.constant 0 : index
    %c0_51 = arith.constant 0 : index
    %173 = vector.load %arg6[%c0_50, %c0_51] : memref<32x64xf32, #tpu.memory_space<vmem>>, vector<32x64xf32>
    tpu.vector_store %arg6[%c0_50, %c0_51], %172 {strides = array<i32>} : memref<32x64xf32, #tpu.memory_space<vmem>>, vector<32x64xf32>,
    return
  }
  func.func @transform_0(%arg0: i32) -> (i32, i32) {
    %c0_i32 = arith.constant 0 : i32
    %c0_i32_0 = arith.constant 0 : i32
    return %arg0, %c0_i32 : i32, i32
  }
  func.func @transform_1(%arg0: i32) -> (i32, i32) {
    %c0_i32 = arith.constant 0 : i32
    %c0_i32_0 = arith.constant 0 : i32
    %c0_i32_1 = arith.constant 0 : i32
    return %c0_i32, %c0_i32_0 : i32, i32
  }
  func.func @transform_2(%arg0: i32) -> (i32, i32) {
    %c0_i32 = arith.constant 0 : i32
    %c0_i32_0 = arith.constant 0 : i32
    %c0_i32_1 = arith.constant 0 : i32
    return %c0_i32, %c0_i32_0 : i32, i32
  }
  func.func @transform_3(%arg0: i32) -> (i32, i32) {
    %c0_i32 = arith.constant 0 : i32
    %c0_i32_0 = arith.constant 0 : i32
    %c0_i32_1 = arith.constant 0 : i32
    return %c0_i32, %c0_i32_0 : i32, i32
  }
  func.func @transform_4(%arg0: i32) -> (i32, i32) {
    %c0_i32 = arith.constant 0 : i32
    %c0_i32_0 = arith.constant 0 : i32
    %c0_i32_1 = arith.constant 0 : i32
    return %c0_i32, %c0_i32_0 : i32, i32
  }
  func.func @transform_5(%arg0: i32) -> (i32, i32) {
    %c0_i32 = arith.constant 0 : i32
    %c0_i32_0 = arith.constant 0 : i32
    return %arg0, %c0_i32 : i32, i32
  }
}

</mosaic_0001>

<llo_original>
// kernel: tpu_custom_call.1
$region0: #{tpu_custom_call.1}
  #allocation0 [shape = 'u32[]', space=smem, size = 0x4, offset = 0x4, fixed_abs, tag = 'smem constant byte address 0x4 - core index']
  #allocation1 [shape = 'u32[144,128]{1,0:T(1,128)}', space=vmem, size = 0x12000, scoped, tag = 'internal scratch']
  %s0 = inlined_call_operand.vmem [shape: f32[32,64], index: 0, kind: input, shape index: {}]
  %s1 = inlined_call_operand.vmem [shape: bf16[320,64], index: 1, kind: input, shape index: {}]
  %s2 = inlined_call_operand.vmem [shape: bf16[64,64], index: 2, kind: input, shape index: {}]
  %s3 = inlined_call_operand.vmem [shape: f32[32,64], index: 3, kind: input, shape index: {}]
  %s4 = inlined_call_operand.vmem [shape: f32[32,64], index: 4, kind: input, shape index: {}]
  %s5 = inlined_call_operand.hbm [shape: f32[32,64], index: 5, kind: output, shape index: {}]
  %s6 = sld [smem:[#allocation0]]
  $region30: #{tpu_custom_call.1} parent=0
    _
  %s8 = ssub.s32 1, %s6
  %s9 = scalar_select 0, %s8, %s6
  $region1: #{tpu_custom_call.1} parent=0
    #allocation2 [shape = 'u8[16384]{0}', space=vmem, size = 0x4000, scoped, tag = 'output window, operand 0, single buffered']
    #allocation3 [shape = 's32[1]{0}', space=sflag, size = 0x4, scoped, tag = 'scoped memory for tpu_custom_call.1']
    %10 = vsyncpa [#allocation3], 0
    // Predicated region
    $region2: #{tpu_custom_call.1} parent=1 // pred_check
      _
    $region3: #{tpu_custom_call.1} parent=1 // pred_check_branch
      %12 = sbr.rel (0) target = $region5
    $region4: #{tpu_custom_call.1} parent=1 // pred_region
      _
    $region5: #{tpu_custom_call.1} parent=1 // pred_fallthru
      _
    // Predicated region
    $region6: #{tpu_custom_call.1} parent=1 // pred_check
      _
    $region7: #{tpu_custom_call.1} parent=1 // pred_check_branch
      %14 = sbr.rel (0) target = $region9
    $region8: #{tpu_custom_call.1} parent=1 // pred_region
      _
    $region9: #{tpu_custom_call.1} parent=1 // pred_fallthru
      _
    // Predicated region
    $region10: #{tpu_custom_call.1} parent=1 // pred_check
      _
    $region11: #{tpu_custom_call.1} parent=1 // pred_check_branch
      %16 = sbr.rel (0) target = $region13
    $region12: #{tpu_custom_call.1} parent=1 // pred_region
      _
    $region13: #{tpu_custom_call.1} parent=1 // pred_fallthru
      _
    // Predicated region
    $region14: #{tpu_custom_call.1} parent=1 // pred_check
      _
    $region15: #{tpu_custom_call.1} parent=1 // pred_check_branch
      %18 = sbr.rel (0) target = $region17
    $region16: #{tpu_custom_call.1} parent=1 // pred_region
      _
    $region17: #{tpu_custom_call.1} parent=1 // pred_fallthru
      _
    // Predicated region
    $region18: #{tpu_custom_call.1} parent=1 // pred_check
      _
    $region19: #{tpu_custom_call.1} parent=1 // pred_check_branch
      %20 = sbr.rel (0) target = $region21
    $region20: #{tpu_custom_call.1} parent=1 // pred_region
      _
    $region21: #{tpu_custom_call.1} parent=1 // pred_fallthru
      _
    %v22 = vld [vmem:[%s0] sm:$0xff]
    %v23 = vld [vmem:[%s0 + $0x8] sm:$0xff]
    %v24 = vld [vmem:[%s0 + $0x10] sm:$0xff]
    %v25 = vld [vmem:[%s0 + $0x18] sm:$0xff]
    %v26 = vpack.c.bf16 %v23, %v22
    %v27 = vpack.c.bf16 %v25, %v24
    %v28 = vld [vmem:[%s1] sm:$0xf]
    %v29 = vld [vmem:[%s1 + $0x4] sm:$0xf]
    %v30 = vld [vmem:[%s1 + $0x8] sm:$0xf]
    %v31 = vld [vmem:[%s1 + $0xc] sm:$0xf]
    %v32 = vld [vmem:[%s1 + $0x10] sm:$0xf]
    %v33 = vld [vmem:[%s1 + $0x14] sm:$0xf]
    %v34 = vld [vmem:[%s1 + $0x18] sm:$0xf]
    %v35 = vld [vmem:[%s1 + $0x1c] sm:$0xf]
    %v36 = vld [vmem:[%s1 + $0x20] sm:$0xf]
    %v37 = vld [vmem:[%s1 + $0x24] sm:$0xf]
    %v38 = vld [vmem:[%s1 + $0x28] sm:$0xf]
    %v39 = vld [vmem:[%s1 + $0x2c] sm:$0xf]
    %v40 = vld [vmem:[%s1 + $0x30] sm:$0xf]
    %v41 = vld [vmem:[%s1 + $0x34] sm:$0xf]
    %v42 = vld [vmem:[%s1 + $0x38] sm:$0xf]
    %v43 = vld [vmem:[%s1 + $0x3c] sm:$0xf]
    %v44 = vld [vmem:[%s1 + $0x40] sm:$0xf]
    %v45 = vld [vmem:[%s1 + $0x44] sm:$0xf]
    %v46 = vld [vmem:[%s1 + $0x48] sm:$0xf]
    %v47 = vld [vmem:[%s1 + $0x4c] sm:$0xf]
    %v48 = vld [vmem:[%s1 + $0x50] sm:$0xf]
    %v49 = vld [vmem:[%s1 + $0x54] sm:$0xf]
    %v50 = vld [vmem:[%s1 + $0x58] sm:$0xf]
    %v51 = vld [vmem:[%s1 + $0x5c] sm:$0xf]
    %v52 = vld [vmem:[%s1 + $0x60] sm:$0xf]
    %v53 = vld [vmem:[%s1 + $0x64] sm:$0xf]
    %v54 = vld [vmem:[%s1 + $0x68] sm:$0xf]
    %v55 = vld [vmem:[%s1 + $0x6c] sm:$0xf]
    %v56 = vld [vmem:[%s1 + $0x70] sm:$0xf]
    %v57 = vld [vmem:[%s1 + $0x74] sm:$0xf]
    %v58 = vld [vmem:[%s1 + $0x78] sm:$0xf]
    %v59 = vld [vmem:[%s1 + $0x7c] sm:$0xf]
    %v60 = vld [vmem:[%s1 + $0x80] sm:$0xf]
    %v61 = vld [vmem:[%s1 + $0x84] sm:$0xf]
    %v62 = vld [vmem:[%s1 + $0x88] sm:$0xf]
    %v63 = vld [vmem:[%s1 + $0x8c] sm:$0xf]
    %v64 = vld [vmem:[%s1 + $0x90] sm:$0xf]
    %v65 = vld [vmem:[%s1 + $0x94] sm:$0xf]
    %v66 = vld [vmem:[%s1 + $0x98] sm:$0xf]
    %v67 = vld [vmem:[%s1 + $0x9c] sm:$0xf]
    %v108 = vunpack.c.l.b16 %v28
    %v109 = vunpack.c.l.b16 %v29
    %v110 = vunpack.c.l.b16 %v30
    %v111 = vunpack.c.l.b16 %v31
    %v112 = vunpack.c.l.b16 %v32
    %v113 = vunpack.c.l.b16 %v33
    %v114 = vunpack.c.l.b16 %v34
    %v115 = vunpack.c.l.b16 %v35
    %v116 = vunpack.c.l.b16 %v36
    %v117 = vunpack.c.l.b16 %v37
    %v118 = vunpack.c.l.b16 %v38
    %v119 = vunpack.c.l.b16 %v39
    %v120 = vunpack.c.l.b16 %v40
    %v121 = vunpack.c.l.b16 %v41
    %v122 = vunpack.c.l.b16 %v42
    %v123 = vunpack.c.l.b16 %v43
    %v124 = vunpack.c.l.b16 %v44
    %v125 = vunpack.c.l.b16 %v45
    %v126 = vunpack.c.l.b16 %v46
    %v127 = vunpack.c.l.b16 %v47
    %v128 = vunpack.c.l.b16 %v48
    %v129 = vunpack.c.l.b16 %v49
    %v130 = vunpack.c.l.b16 %v50
    %v131 = vunpack.c.l.b16 %v51
    %v132 = vunpack.c.l.b16 %v52
    %v133 = vunpack.c.l.b16 %v53
    %v134 = vunpack.c.l.b16 %v54
    %v135 = vunpack.c.l.b16 %v55
    %v136 = vunpack.c.l.b16 %v56
    %v137 = vunpack.c.l.b16 %v57
    %v138 = vunpack.c.l.b16 %v58
    %v139 = vunpack.c.l.b16 %v59
    %v140 = vunpack.c.l.b16 %v60
    %v141 = vunpack.c.l.b16 %v61
    %v142 = vunpack.c.l.b16 %v62
    %v143 = vunpack.c.l.b16 %v63
    %v144 = vunpack.c.l.b16 %v64
    %v145 = vunpack.c.l.b16 %v65
    %v146 = vunpack.c.l.b16 %v66
    %v147 = vunpack.c.l.b16 %v67
    %v148 = vpack.c.b16 %v109, %v108
    %v149 = vpack.c.b16 %v111, %v110
    %v150 = vpack.c.b16 %v113, %v112
    %v151 = vpack.c.b16 %v115, %v114
    %v152 = vpack.c.b16 %v117, %v116
    %v153 = vpack.c.b16 %v119, %v118
    %v154 = vpack.c.b16 %v121, %v120
    %v155 = vpack.c.b16 %v123, %v122
    %v156 = vpack.c.b16 %v125, %v124
    %v157 = vpack.c.b16 %v127, %v126
    %v158 = vpack.c.b16 %v129, %v128
    %v159 = vpack.c.b16 %v131, %v130
    %v160 = vpack.c.b16 %v133, %v132
    %v161 = vpack.c.b16 %v135, %v134
    %v162 = vpack.c.b16 %v137, %v136
    %v163 = vpack.c.b16 %v139, %v138
    %v164 = vpack.c.b16 %v141, %v140
    %v165 = vpack.c.b16 %v143, %v142
    %v166 = vpack.c.b16 %v145, %v144
    %v167 = vpack.c.b16 %v147, %v146
    %vm168 = vcmask 523264
    %v170 = vsel %vm168, %v26, 0
    %v173 = vsel %vm168, %v27, 0
    %v176 = vsel %vm168, %v148, 0
    %v179 = vsel %vm168, %v149, 0
    %v182 = vsel %vm168, %v150, 0
    %v185 = vsel %vm168, %v151, 0
    %v188 = vsel %vm168, %v152, 0
    %v191 = vsel %vm168, %v153, 0
    %v194 = vsel %vm168, %v154, 0
    %v197 = vsel %vm168, %v155, 0
    %v200 = vsel %vm168, %v156, 0
    %v203 = vsel %vm168, %v157, 0
    %v206 = vsel %vm168, %v158, 0
    %v209 = vsel %vm168, %v159, 0
    %v212 = vsel %vm168, %v160, 0
    %v215 = vsel %vm168, %v161, 0
    %v218 = vsel %vm168, %v162, 0
    %v221 = vsel %vm168, %v163, 0
    %v224 = vsel %vm168, %v164, 0
    %v227 = vsel %vm168, %v165, 0
    %v230 = vsel %vm168, %v166, 0
    %v233 = vsel %vm168, %v167, 0
    %235 = vmatprep.subr.bf16.mxu0 0
    %236 = vmatpush1.bf16.xpose.msra.mxu0 %v197
    %237 = vmatprep.subr.bf16.mxu0 0
    %238 = vmatpush1.bf16.xpose.msra.mxu0 %v194
    %239 = vmatprep.subr.bf16.mxu0 0
    %240 = vmatpush1.bf16.xpose.msra.mxu0 %v191
    %241 = vmatprep.subr.bf16.mxu0 0
    %242 = vmatpush1.bf16.xpose.msra.mxu0 %v188
    %243 = vmatprep.subr.bf16.mxu0 0
    %244 = vmatpush1.bf16.xpose.msra.mxu0 %v185
    %245 = vmatprep.subr.bf16.mxu0 0
    %246 = vmatpush1.bf16.xpose.msra.mxu0 %v182
    %247 = vmatprep.subr.bf16.mxu0 0
    %248 = vmatpush1.bf16.xpose.msra.mxu0 %v179
    %249 = vmatprep.subr.bf16.mxu0 0
    %250 = vmatpush1.bf16.xpose.msra.mxu0 %v176
    %251 = vmatprep.subr.bf16.mxu0 0
    %252 = vmatpush2.bf16.xpose.msra.mxu0 %v221
    %253 = vmatprep.subr.bf16.mxu0 0
    %254 = vmatpush2.bf16.xpose.msra.mxu0 %v218
    %255 = vmatprep.subr.bf16.mxu0 0
    %256 = vmatpush2.bf16.xpose.msra.mxu0 %v215
    %257 = vmatprep.subr.bf16.mxu0 0
    %258 = vmatpush2.bf16.xpose.msra.mxu0 %v212
    %259 = vmatprep.subr.bf16.mxu0 0
    %260 = vmatpush2.bf16.xpose.msra.mxu0 %v209
    %261 = vmatprep.subr.bf16.mxu0 0
    %262 = vmatpush2.bf16.xpose.msra.mxu0 %v206
    %263 = vmatprep.subr.bf16.mxu0 0
    %264 = vmatpush2.bf16.xpose.msra.mxu0 %v203
    %265 = vmatprep.subr.bf16.mxu0 0
    %266 = vmatpush2.bf16.xpose.msra.mxu0 %v200
    %267 = vmatprep.mubr.bf16.mxu0 0
    %268 = vmatmul.mubr.bf16.gmra.mxu0 %v170
    %v269 = vpop.f32.mrf.mxu0
    %v270 = vadd.f32 0.0, %v269
    %v271 = vpop.f32.mrf.mxu0
    %v272 = vadd.f32 0.0, %v271
    %v273 = vpop.f32.mrf.mxu0
    %v274 = vadd.f32 0.0, %v273
    %v275 = vpop.f32.mrf.mxu0
    %v276 = vadd.f32 0.0, %v275
    %277 = vmatprep.mubr.bf16.mxu0 0
    %278 = vmatmul.mubr.bf16.gmra.mxu0 %v173
    %v279 = vpop.f32.mrf.mxu0
    %v280 = vadd.f32 0.0, %v279
    %v281 = vpop.f32.mrf.mxu0
    %v282 = vadd.f32 0.0, %v281
    %v283 = vpop.f32.mrf.mxu0
    %v284 = vadd.f32 0.0, %v283
    %v285 = vpop.f32.mrf.mxu0
    %v286 = vadd.f32 0.0, %v285
    %287 = vdwg.mxu0
    %288 = vmatprep.subr.bf16.mxu0 0
    %289 = vmatpush1.bf16.xpose.msra.mxu0 0
    %290 = vmatprep.subr.bf16.mxu0 0
    %291 = vmatpush1.bf16.xpose.msra.mxu0 0
    %292 = vmatprep.subr.bf16.mxu0 0
    %293 = vmatpush1.bf16.xpose.msra.mxu0 0
    %294 = vmatprep.subr.bf16.mxu0 0
    %295 = vmatpush1.bf16.xpose.msra.mxu0 0
    %296 = vmatprep.subr.bf16.mxu0 0
    %297 = vmatpush1.bf16.xpose.msra.mxu0 %v233
    %298 = vmatprep.subr.bf16.mxu0 0
    %299 = vmatpush1.bf16.xpose.msra.mxu0 %v230
    %300 = vmatprep.subr.bf16.mxu0 0
    %301 = vmatpush1.bf16.xpose.msra.mxu0 %v227
    %302 = vmatprep.subr.bf16.mxu0 0
    %303 = vmatpush1.bf16.xpose.msra.mxu0 %v224
    %304 = vmatprep.subr.bf16.mxu0 0
    %305 = vmatpush2.bf16.xpose.msra.mxu0 0
    %306 = vmatprep.subr.bf16.mxu0 0
    %307 = vmatpush2.bf16.xpose.msra.mxu0 0
    %308 = vmatprep.subr.bf16.mxu0 0
    %309 = vmatpush2.bf16.xpose.msra.mxu0 0
    %310 = vmatprep.subr.bf16.mxu0 0
    %311 = vmatpush2.bf16.xpose.msra.mxu0 0
    %312 = vmatprep.subr.bf16.mxu0 0
    %313 = vmatpush2.bf16.xpose.msra.mxu0 0
    %314 = vmatprep.subr.bf16.mxu0 0
    %315 = vmatpush2.bf16.xpose.msra.mxu0 0
    %316 = vmatprep.subr.bf16.mxu0 0
    %317 = vmatpush2.bf16.xpose.msra.mxu0 0
    %318 = vmatprep.subr.bf16.mxu0 0
    %319 = vmatpush2.bf16.xpose.msra.mxu0 0
    %320 = vmatprep.mubr.bf16.mxu0 0
    %321 = vmatmul.mubr.bf16.gmra.mxu0 %v170
    %v322 = vpop.f32.mrf.mxu0
    %v323 = vadd.f32 0.0, %v322
    %v324 = vpop.f32.mrf.mxu0
    %v325 = vpop.f32.mrf.mxu0
    %v326 = vadd.f32 0.0, %v325
    %v327 = vpop.f32.mrf.mxu0
    %328 = vmatprep.mubr.bf16.mxu0 0
    %329 = vmatmul.mubr.bf16.gmra.mxu0 %v173
    %v330 = vpop.f32.mrf.mxu0
    %v331 = vadd.f32 0.0, %v330
    %v332 = vpop.f32.mrf.mxu0
    %v333 = vpop.f32.mrf.mxu0
    %v334 = vadd.f32 0.0, %v333
    %v335 = vpop.f32.mrf.mxu0
    %336 = vdwg.mxu0
    %v337 = vld [vmem:[%s3] sm:$0xff]
    %v338 = vld [vmem:[%s3 + $0x8] sm:$0xff]
    %v339 = vld [vmem:[%s3 + $0x10] sm:$0xff]
    %v340 = vld [vmem:[%s3 + $0x18] sm:$0xff]
    %v341 = vld [vmem:[%s4] sm:$0xff]
    %v342 = vld [vmem:[%s4 + $0x8] sm:$0xff]
    %v343 = vld [vmem:[%s4 + $0x10] sm:$0xff]
    %v344 = vld [vmem:[%s4 + $0x18] sm:$0xff]
    %v345 = vmul.f32 %v270, %v337
    %v346 = vmul.f32 %v274, %v338
    %v347 = vmul.f32 %v280, %v339
    %v348 = vmul.f32 %v284, %v340
    %353 = vrot.lane.b32.xlu0 %v341, 64
    %v354 = vpop.permute.xlu0 %353
    %355 = vrot.lane.b32.xlu0 %v342, 64
    %v356 = vpop.permute.xlu0 %355
    %357 = vrot.lane.b32.xlu0 %v343, 64
    %v358 = vpop.permute.xlu0 %357
    %359 = vrot.lane.b32.xlu0 %v344, 64
    %v360 = vpop.permute.xlu0 %359
    %v365 = vmul.f32 %v272, %v354
    %v366 = vmul.f32 %v276, %v356
    %v367 = vmul.f32 %v282, %v358
    %v368 = vmul.f32 %v286, %v360
    %373 = vrot.lane.b32.xlu0 %v365, 64
    %v374 = vpop.permute.xlu0 %373
    %375 = vrot.lane.b32.xlu0 %v366, 64
    %v376 = vpop.permute.xlu0 %375
    %377 = vrot.lane.b32.xlu0 %v367, 64
    %v378 = vpop.permute.xlu0 %377
    %379 = vrot.lane.b32.xlu0 %v368, 64
    %v380 = vpop.permute.xlu0 %379
    %v385 = vadd.f32 %v345, %v374
    %v386 = vadd.f32 %v346, %v376
    %v387 = vadd.f32 %v347, %v378
    %v388 = vadd.f32 %v348, %v380
    %393 = vrot.lane.b32.xlu0 %v337, 64
    %v394 = vpop.permute.xlu0 %393
    %395 = vrot.lane.b32.xlu0 %v338, 64
    %v396 = vpop.permute.xlu0 %395
    %397 = vrot.lane.b32.xlu0 %v339, 64
    %v398 = vpop.permute.xlu0 %397
    %399 = vrot.lane.b32.xlu0 %v340, 64
    %v400 = vpop.permute.xlu0 %399
    %v405 = vmul.f32 %v270, %v394
    %v406 = vmul.f32 %v274, %v396
    %v407 = vmul.f32 %v280, %v398
    %v408 = vmul.f32 %v284, %v400
    %v409 = vmul.f32 %v323, %v341
    %v410 = vmul.f32 %v326, %v342
    %v411 = vmul.f32 %v331, %v343
    %v412 = vmul.f32 %v334, %v344
    %417 = vrot.lane.b32.xlu0 %v409, 64
    %v418 = vpop.permute.xlu0 %417
    %419 = vrot.lane.b32.xlu0 %v410, 64
    %v420 = vpop.permute.xlu0 %419
    %421 = vrot.lane.b32.xlu0 %v411, 64
    %v422 = vpop.permute.xlu0 %421
    %423 = vrot.lane.b32.xlu0 %v412, 64
    %v424 = vpop.permute.xlu0 %423
    %v429 = vadd.f32 %v405, %v418
    %v430 = vadd.f32 %v406, %v420
    %v431 = vadd.f32 %v407, %v422
    %v432 = vadd.f32 %v408, %v424
    %v433 = vpack.c.bf16 %v386, %v385
    %v434 = vpack.c.bf16 %v388, %v387
    %v435 = vpack.c.bf16 %v430, %v429
    %v436 = vpack.c.bf16 %v432, %v431
    %v437 = vpack.c.bf16 %v276, %v272
    %v438 = vpack.c.bf16 %v286, %v282
    %v439 = vlaneseq
    %v440 = vshrl.u32 %v439, 7
    %v441 = vadd.s32 %v440, 8
    %v442 = vlaneseq
    %v443 = vand.u32 %v442, 127
    %vm444 = vcmp.le.s32.totalorder %v443, %v440
    %vm445 = vcmp.le.s32.totalorder %v443, %v441
    %447 = vrot.lane.b32.xlu0 %v435, 64
    %v448 = vpop.permute.xlu0 %447
    %vm449 = vcmask 130048
    %v451 = vsel %vm449, %v433, 0
    %v454 = vsel %vm449, %v448, 0
    %456 = vmatprep.subr.bf16.mxu0 0
    %457 = vmatpush1.bf16.xpose.msra.mxu0 0
    %458 = vmatprep.subr.bf16.mxu0 0
    %459 = vmatpush1.bf16.xpose.msra.mxu0 0
    %460 = vmatprep.subr.bf16.mxu0 0
    %461 = vmatpush1.bf16.xpose.msra.mxu0 0
    %462 = vmatprep.subr.bf16.mxu0 0
    %463 = vmatpush1.bf16.xpose.msra.mxu0 0
    %464 = vmatprep.subr.bf16.mxu0 0
    %465 = vmatpush1.bf16.xpose.msra.mxu0 0
    %466 = vmatprep.subr.bf16.mxu0 0
    %467 = vmatpush1.bf16.xpose.msra.mxu0 0
    %468 = vmatprep.subr.bf16.mxu0 0
    %469 = vmatpush1.bf16.xpose.msra.mxu0 0
    %470 = vmatprep.subr.bf16.mxu0 0
    %471 = vmatpush1.bf16.xpose.msra.mxu0 %v454
    %472 = vmatprep.subr.bf16.mxu0 0
    %473 = vmatpush2.bf16.xpose.msra.mxu0 0
    %474 = vmatprep.subr.bf16.mxu0 0
    %475 = vmatpush2.bf16.xpose.msra.mxu0 0
    %476 = vmatprep.subr.bf16.mxu0 0
    %477 = vmatpush2.bf16.xpose.msra.mxu0 0
    %478 = vmatprep.subr.bf16.mxu0 0
    %479 = vmatpush2.bf16.xpose.msra.mxu0 0
    %480 = vmatprep.subr.bf16.mxu0 0
    %481 = vmatpush2.bf16.xpose.msra.mxu0 0
    %482 = vmatprep.subr.bf16.mxu0 0
    %483 = vmatpush2.bf16.xpose.msra.mxu0 0
    %484 = vmatprep.subr.bf16.mxu0 0
    %485 = vmatpush2.bf16.xpose.msra.mxu0 0
    %486 = vmatprep.subr.bf16.mxu0 0
    %487 = vmatpush2.bf16.xpose.msra.mxu0 0
    %488 = vmatprep.mubr.bf16.mxu0 0
    %489 = vmatmul.mubr.bf16.gmra.mxu0 %v451
    %v490 = vpop.f32.mrf.mxu0
    %v491 = vadd.f32 0.0, %v490
    %v492 = vpop.f32.mrf.mxu0
    %v493 = vpop.f32.mrf.mxu0
    %v494 = vadd.f32 0.0, %v493
    %v495 = vpop.f32.mrf.mxu0
    %496 = vdwg.mxu0
    %v497 = vsel %vm444, %v491, -1e+09
    %v498 = vsel %vm445, %v494, -1e+09
    %v499 = vsel %vm449, %v497, -inf
    %500 = vmax.xlane.f32.xlu0 %v499
    %v501 = vpop.xlane.xlu0 %500
    %v502 = vsel %vm449, %v498, -inf
    %503 = vmax.xlane.f32.xlu0 %v502
    %v504 = vpop.xlane.xlu0 %503
    %v505 = vsub.f32 %v497, %v501
    %v506 = vsub.f32 %v498, %v504
    %v507 = vmul.f32 %v505, 1.442695
    %v508 = vpow.pop %v507
    %v509 = vmul.f32 %v506, 1.442695
    %v510 = vpow.pop %v509
    %v511 = vsel %vm449, %v508, 0.0
    %512 = vadd.xlane.f32.xlu0 %v511
    %v513 = vpop.xlane.xlu0 %512
    %v514 = vsel %vm449, %v510, 0.0
    %515 = vadd.xlane.f32.xlu0 %v514
    %v516 = vpop.xlane.xlu0 %515
    %v517 = vrcp.pop %v513
    %v518 = vrcp.pop %v516
    %v519 = vmul.f32 %v508, %v517
    %v520 = vmul.f32 %v510, %v518
    %v521 = vpack.c.bf16 %v520, %v519
    %v523 = vsel %vm449, %v521, 0
    %525 = vmatprep.subr.bf16.mxu0 0
    %526 = vmatpush1.bf16.msra.mxu0 0
    %527 = vmatprep.subr.bf16.mxu0 0
    %528 = vmatpush1.bf16.msra.mxu0 0
    %529 = vmatprep.subr.bf16.mxu0 0
    %530 = vmatpush1.bf16.msra.mxu0 0
    %531 = vmatprep.subr.bf16.mxu0 0
    %532 = vmatpush1.bf16.msra.mxu0 0
    %533 = vmatprep.subr.bf16.mxu0 0
    %534 = vmatpush1.bf16.msra.mxu0 0
    %535 = vmatprep.subr.bf16.mxu0 0
    %536 = vmatpush1.bf16.msra.mxu0 0
    %537 = vmatprep.subr.bf16.mxu0 0
    %538 = vmatpush1.bf16.msra.mxu0 0
    %539 = vmatprep.subr.bf16.mxu0 0
    %540 = vmatpush1.bf16.msra.mxu0 %v437
    %541 = vmatprep.subr.bf16.mxu0 0
    %542 = vmatpush2.bf16.msra.mxu0 0
    %543 = vmatprep.subr.bf16.mxu0 0
    %544 = vmatpush2.bf16.msra.mxu0 0
    %545 = vmatprep.subr.bf16.mxu0 0
    %546 = vmatpush2.bf16.msra.mxu0 0
    %547 = vmatprep.subr.bf16.mxu0 0
    %548 = vmatpush2.bf16.msra.mxu0 0
    %549 = vmatprep.subr.bf16.mxu0 0
    %550 = vmatpush2.bf16.msra.mxu0 0
    %551 = vmatprep.subr.bf16.mxu0 0
    %552 = vmatpush2.bf16.msra.mxu0 0
    %553 = vmatprep.subr.bf16.mxu0 0
    %554 = vmatpush2.bf16.msra.mxu0 0
    %555 = vmatprep.subr.bf16.mxu0 0
    %556 = vmatpush2.bf16.msra.mxu0 0
    %557 = vmatprep.mubr.bf16.mxu0 0
    %558 = vmatmul.mubr.bf16.gmra.mxu0 %v523
    %v559 = vpop.f32.mrf.mxu0
    %v560 = vadd.f32 0.0, %v559
    %v561 = vpop.f32.mrf.mxu0
    %v562 = vpop.f32.mrf.mxu0
    %v563 = vadd.f32 0.0, %v562
    %v564 = vpop.f32.mrf.mxu0
    %565 = vdwg.mxu0
    %567 = vrot.lane.b32.xlu0 %v433, 112
    %v568 = vpop.permute.xlu0 %567
    %569 = vrot.lane.b32.xlu0 %v435, 48
    %v570 = vpop.permute.xlu0 %569
    %v572 = vsel %vm449, %v568, 0
    %v575 = vsel %vm449, %v570, 0
    %577 = vmatprep.subr.bf16.mxu0 0
    %578 = vmatpush1.bf16.xpose.msra.mxu0 0
    %579 = vmatprep.subr.bf16.mxu0 0
    %580 = vmatpush1.bf16.xpose.msra.mxu0 0
    %581 = vmatprep.subr.bf16.mxu0 0
    %582 = vmatpush1.bf16.xpose.msra.mxu0 0
    %583 = vmatprep.subr.bf16.mxu0 0
    %584 = vmatpush1.bf16.xpose.msra.mxu0 0
    %585 = vmatprep.subr.bf16.mxu0 0
    %586 = vmatpush1.bf16.xpose.msra.mxu0 0
    %587 = vmatprep.subr.bf16.mxu0 0
    %588 = vmatpush1.bf16.xpose.msra.mxu0 0
    %589 = vmatprep.subr.bf16.mxu0 0
    %590 = vmatpush1.bf16.xpose.msra.mxu0 0
    %591 = vmatprep.subr.bf16.mxu0 0
    %592 = vmatpush1.bf16.xpose.msra.mxu0 %v575
    %593 = vmatprep.subr.bf16.mxu0 0
    %594 = vmatpush2.bf16.xpose.msra.mxu0 0
    %595 = vmatprep.subr.bf16.mxu0 0
    %596 = vmatpush2.bf16.xpose.msra.mxu0 0
    %597 = vmatprep.subr.bf16.mxu0 0
    %598 = vmatpush2.bf16.xpose.msra.mxu0 0
    %599 = vmatprep.subr.bf16.mxu0 0
    %600 = vmatpush2.bf16.xpose.msra.mxu0 0
    %601 = vmatprep.subr.bf16.mxu0 0
    %602 = vmatpush2.bf16.xpose.msra.mxu0 0
    %603 = vmatprep.subr.bf16.mxu0 0
    %604 = vmatpush2.bf16.xpose.msra.mxu0 0
    %605 = vmatprep.subr.bf16.mxu0 0
    %606 = vmatpush2.bf16.xpose.msra.mxu0 0
    %607 = vmatprep.subr.bf16.mxu0 0
    %608 = vmatpush2.bf16.xpose.msra.mxu0 0
    %609 = vmatprep.mubr.bf16.mxu0 0
    %610 = vmatmul.mubr.bf16.gmra.mxu0 %v572
    %v611 = vpop.f32.mrf.mxu0
    %v612 = vadd.f32 0.0, %v611
    %v613 = vpop.f32.mrf.mxu0
    %v614 = vpop.f32.mrf.mxu0
    %v615 = vadd.f32 0.0, %v614
    %v616 = vpop.f32.mrf.mxu0
    %617 = vdwg.mxu0
    %v618 = vsel %vm444, %v612, -1e+09
    %v619 = vsel %vm445, %v615, -1e+09
    %v620 = vsel %vm449, %v618, -inf
    %621 = vmax.xlane.f32.xlu0 %v620
    %v622 = vpop.xlane.xlu0 %621
    %v623 = vsel %vm449, %v619, -inf
    %624 = vmax.xlane.f32.xlu0 %v623
    %v625 = vpop.xlane.xlu0 %624
    %v626 = vsub.f32 %v618, %v622
    %v627 = vsub.f32 %v619, %v625
    %v628 = vmul.f32 %v626, 1.442695
    %v629 = vpow.pop %v628
    %v630 = vmul.f32 %v627, 1.442695
    %v631 = vpow.pop %v630
    %v632 = vsel %vm449, %v629, 0.0
    %633 = vadd.xlane.f32.xlu0 %v632
    %v634 = vpop.xlane.xlu0 %633
    %v635 = vsel %vm449, %v631, 0.0
    %636 = vadd.xlane.f32.xlu0 %v635
    %v637 = vpop.xlane.xlu0 %636
    %v638 = vrcp.pop %v634
    %v639 = vrcp.pop %v637
    %v640 = vmul.f32 %v629, %v638
    %v641 = vmul.f32 %v631, %v639
    %v642 = vpack.c.bf16 %v641, %v640
    %644 = vrot.lane.b32.xlu0 %v437, 112
    %v645 = vpop.permute.xlu0 %644
    %v648 = vsel %vm449, %v642, 0
    %650 = vmatprep.subr.bf16.mxu0 0
    %651 = vmatpush1.bf16.msra.mxu0 0
    %652 = vmatprep.subr.bf16.mxu0 0
    %653 = vmatpush1.bf16.msra.mxu0 0
    %654 = vmatprep.subr.bf16.mxu0 0
    %655 = vmatpush1.bf16.msra.mxu0 0
    %656 = vmatprep.subr.bf16.mxu0 0
    %657 = vmatpush1.bf16.msra.mxu0 0
    %658 = vmatprep.subr.bf16.mxu0 0
    %659 = vmatpush1.bf16.msra.mxu0 0
    %660 = vmatprep.subr.bf16.mxu0 0
    %661 = vmatpush1.bf16.msra.mxu0 0
    %662 = vmatprep.subr.bf16.mxu0 0
    %663 = vmatpush1.bf16.msra.mxu0 0
    %664 = vmatprep.subr.bf16.mxu0 0
    %665 = vmatpush1.bf16.msra.mxu0 %v645
    %666 = vmatprep.subr.bf16.mxu0 0
    %667 = vmatpush2.bf16.msra.mxu0 0
    %668 = vmatprep.subr.bf16.mxu0 0
    %669 = vmatpush2.bf16.msra.mxu0 0
    %670 = vmatprep.subr.bf16.mxu0 0
    %671 = vmatpush2.bf16.msra.mxu0 0
    %672 = vmatprep.subr.bf16.mxu0 0
    %673 = vmatpush2.bf16.msra.mxu0 0
    %674 = vmatprep.subr.bf16.mxu0 0
    %675 = vmatpush2.bf16.msra.mxu0 0
    %676 = vmatprep.subr.bf16.mxu0 0
    %677 = vmatpush2.bf16.msra.mxu0 0
    %678 = vmatprep.subr.bf16.mxu0 0
    %679 = vmatpush2.bf16.msra.mxu0 0
    %680 = vmatprep.subr.bf16.mxu0 0
    %681 = vmatpush2.bf16.msra.mxu0 0
    %682 = vmatprep.mubr.bf16.mxu0 0
    %683 = vmatmul.mubr.bf16.gmra.mxu0 %v648
    %v684 = vpop.f32.mrf.mxu0
    %v685 = vadd.f32 0.0, %v684
    %v686 = vpop.f32.mrf.mxu0
    %v687 = vpop.f32.mrf.mxu0
    %v688 = vadd.f32 0.0, %v687
    %v689 = vpop.f32.mrf.mxu0
    %690 = vdwg.mxu0
    %691 = vrot.lane.b32.xlu0 %v433, 96
    %v692 = vpop.permute.xlu0 %691
    %693 = vrot.lane.b32.xlu0 %v435, 32
    %v694 = vpop.permute.xlu0 %693
    %v696 = vsel %vm449, %v692, 0
    %v699 = vsel %vm449, %v694, 0
    %701 = vmatprep.subr.bf16.mxu0 0
    %702 = vmatpush1.bf16.xpose.msra.mxu0 0
    %703 = vmatprep.subr.bf16.mxu0 0
    %704 = vmatpush1.bf16.xpose.msra.mxu0 0
    %705 = vmatprep.subr.bf16.mxu0 0
    %706 = vmatpush1.bf16.xpose.msra.mxu0 0
    %707 = vmatprep.subr.bf16.mxu0 0
    %708 = vmatpush1.bf16.xpose.msra.mxu0 0
    %709 = vmatprep.subr.bf16.mxu0 0
    %710 = vmatpush1.bf16.xpose.msra.mxu0 0
    %711 = vmatprep.subr.bf16.mxu0 0
    %712 = vmatpush1.bf16.xpose.msra.mxu0 0
    %713 = vmatprep.subr.bf16.mxu0 0
    %714 = vmatpush1.bf16.xpose.msra.mxu0 0
    %715 = vmatprep.subr.bf16.mxu0 0
    %716 = vmatpush1.bf16.xpose.msra.mxu0 %v699
    %717 = vmatprep.subr.bf16.mxu0 0
    %718 = vmatpush2.bf16.xpose.msra.mxu0 0
    %719 = vmatprep.subr.bf16.mxu0 0
    %720 = vmatpush2.bf16.xpose.msra.mxu0 0
    %721 = vmatprep.subr.bf16.mxu0 0
    %722 = vmatpush2.bf16.xpose.msra.mxu0 0
    %723 = vmatprep.subr.bf16.mxu0 0
    %724 = vmatpush2.bf16.xpose.msra.mxu0 0
    %725 = vmatprep.subr.bf16.mxu0 0
    %726 = vmatpush2.bf16.xpose.msra.mxu0 0
    %727 = vmatprep.subr.bf16.mxu0 0
    %728 = vmatpush2.bf16.xpose.msra.mxu0 0
    %729 = vmatprep.subr.bf16.mxu0 0
    %730 = vmatpush2.bf16.xpose.msra.mxu0 0
    %731 = vmatprep.subr.bf16.mxu0 0
    %732 = vmatpush2.bf16.xpose.msra.mxu0 0
    %733 = vmatprep.mubr.bf16.mxu0 0
    %734 = vmatmul.mubr.bf16.gmra.mxu0 %v696
    %v735 = vpop.f32.mrf.mxu0
    %v736 = vadd.f32 0.0, %v735
    %v737 = vpop.f32.mrf.mxu0
    %v738 = vpop.f32.mrf.mxu0
    %v739 = vadd.f32 0.0, %v738
    %v740 = vpop.f32.mrf.mxu0
    %741 = vdwg.mxu0
    %v742 = vsel %vm444, %v736, -1e+09
    %v743 = vsel %vm445, %v739, -1e+09
    %v744 = vsel %vm449, %v742, -inf
    %745 = vmax.xlane.f32.xlu0 %v744
    %v746 = vpop.xlane.xlu0 %745
    %v747 = vsel %vm449, %v743, -inf
    %748 = vmax.xlane.f32.xlu0 %v747
    %v749 = vpop.xlane.xlu0 %748
    %v750 = vsub.f32 %v742, %v746
    %v751 = vsub.f32 %v743, %v749
    %v752 = vmul.f32 %v750, 1.442695
    %v753 = vpow.pop %v752
    %v754 = vmul.f32 %v751, 1.442695
    %v755 = vpow.pop %v754
    %v756 = vsel %vm449, %v753, 0.0
    %757 = vadd.xlane.f32.xlu0 %v756
    %v758 = vpop.xlane.xlu0 %757
    %v759 = vsel %vm449, %v755, 0.0
    %760 = vadd.xlane.f32.xlu0 %v759
    %v761 = vpop.xlane.xlu0 %760
    %v762 = vrcp.pop %v758
    %v763 = vrcp.pop %v761
    %v764 = vmul.f32 %v753, %v762
    %v765 = vmul.f32 %v755, %v763
    %v766 = vpack.c.bf16 %v765, %v764
    %767 = vrot.lane.b32.xlu0 %v437, 96
    %v768 = vpop.permute.xlu0 %767
    %v771 = vsel %vm449, %v766, 0
    %773 = vmatprep.subr.bf16.mxu0 0
    %774 = vmatpush1.bf16.msra.mxu0 0
    %775 = vmatprep.subr.bf16.mxu0 0
    %776 = vmatpush1.bf16.msra.mxu0 0
    %777 = vmatprep.subr.bf16.mxu0 0
    %778 = vmatpush1.bf16.msra.mxu0 0
    %779 = vmatprep.subr.bf16.mxu0 0
    %780 = vmatpush1.bf16.msra.mxu0 0
    %781 = vmatprep.subr.bf16.mxu0 0
    %782 = vmatpush1.bf16.msra.mxu0 0
    %783 = vmatprep.subr.bf16.mxu0 0
    %784 = vmatpush1.bf16.msra.mxu0 0
    %785 = vmatprep.subr.bf16.mxu0 0
    %786 = vmatpush1.bf16.msra.mxu0 0
    %787 = vmatprep.subr.bf16.mxu0 0
    %788 = vmatpush1.bf16.msra.mxu0 %v768
    %789 = vmatprep.subr.bf16.mxu0 0
    %790 = vmatpush2.bf16.msra.mxu0 0
    %791 = vmatprep.subr.bf16.mxu0 0
    %792 = vmatpush2.bf16.msra.mxu0 0
    %793 = vmatprep.subr.bf16.mxu0 0
    %794 = vmatpush2.bf16.msra.mxu0 0
    %795 = vmatprep.subr.bf16.mxu0 0
    %796 = vmatpush2.bf16.msra.mxu0 0
    %797 = vmatprep.subr.bf16.mxu0 0
    %798 = vmatpush2.bf16.msra.mxu0 0
    %799 = vmatprep.subr.bf16.mxu0 0
    %800 = vmatpush2.bf16.msra.mxu0 0
    %801 = vmatprep.subr.bf16.mxu0 0
    %802 = vmatpush2.bf16.msra.mxu0 0
    %803 = vmatprep.subr.bf16.mxu0 0
    %804 = vmatpush2.bf16.msra.mxu0 0
    %805 = vmatprep.mubr.bf16.mxu0 0
    %806 = vmatmul.mubr.bf16.gmra.mxu0 %v771
    %v807 = vpop.f32.mrf.mxu0
    %v808 = vadd.f32 0.0, %v807
    %v809 = vpop.f32.mrf.mxu0
    %v810 = vpop.f32.mrf.mxu0
    %v811 = vadd.f32 0.0, %v810
    %v812 = vpop.f32.mrf.mxu0
    %813 = vdwg.mxu0
    %814 = vrot.lane.b32.xlu0 %v433, 80
    %v815 = vpop.permute.xlu0 %814
    %816 = vrot.lane.b32.xlu0 %v435, 16
    %v817 = vpop.permute.xlu0 %816
    %v819 = vsel %vm449, %v815, 0
    %v822 = vsel %vm449, %v817, 0
    %824 = vmatprep.subr.bf16.mxu0 0
    %825 = vmatpush1.bf16.xpose.msra.mxu0 0
    %826 = vmatprep.subr.bf16.mxu0 0
    %827 = vmatpush1.bf16.xpose.msra.mxu0 0
    %828 = vmatprep.subr.bf16.mxu0 0
    %829 = vmatpush1.bf16.xpose.msra.mxu0 0
    %830 = vmatprep.subr.bf16.mxu0 0
    %831 = vmatpush1.bf16.xpose.msra.mxu0 0
    %832 = vmatprep.subr.bf16.mxu0 0
    %833 = vmatpush1.bf16.xpose.msra.mxu0 0
    %834 = vmatprep.subr.bf16.mxu0 0
    %835 = vmatpush1.bf16.xpose.msra.mxu0 0
    %836 = vmatprep.subr.bf16.mxu0 0
    %837 = vmatpush1.bf16.xpose.msra.mxu0 0
    %838 = vmatprep.subr.bf16.mxu0 0
    %839 = vmatpush1.bf16.xpose.msra.mxu0 %v822
    %840 = vmatprep.subr.bf16.mxu0 0
    %841 = vmatpush2.bf16.xpose.msra.mxu0 0
    %842 = vmatprep.subr.bf16.mxu0 0
    %843 = vmatpush2.bf16.xpose.msra.mxu0 0
    %844 = vmatprep.subr.bf16.mxu0 0
    %845 = vmatpush2.bf16.xpose.msra.mxu0 0
    %846 = vmatprep.subr.bf16.mxu0 0
    %847 = vmatpush2.bf16.xpose.msra.mxu0 0
    %848 = vmatprep.subr.bf16.mxu0 0
    %849 = vmatpush2.bf16.xpose.msra.mxu0 0
    %850 = vmatprep.subr.bf16.mxu0 0
    %851 = vmatpush2.bf16.xpose.msra.mxu0 0
    %852 = vmatprep.subr.bf16.mxu0 0
    %853 = vmatpush2.bf16.xpose.msra.mxu0 0
    %854 = vmatprep.subr.bf16.mxu0 0
    %855 = vmatpush2.bf16.xpose.msra.mxu0 0
    %856 = vmatprep.mubr.bf16.mxu0 0
    %857 = vmatmul.mubr.bf16.gmra.mxu0 %v819
    %v858 = vpop.f32.mrf.mxu0
    %v859 = vadd.f32 0.0, %v858
    %v860 = vpop.f32.mrf.mxu0
    %v861 = vpop.f32.mrf.mxu0
    %v862 = vadd.f32 0.0, %v861
    %v863 = vpop.f32.mrf.mxu0
    %864 = vdwg.mxu0
    %v865 = vsel %vm444, %v859, -1e+09
    %v866 = vsel %vm445, %v862, -1e+09
    %v867 = vsel %vm449, %v865, -inf
    %868 = vmax.xlane.f32.xlu0 %v867
    %v869 = vpop.xlane.xlu0 %868
    %v870 = vsel %vm449, %v866, -inf
    %871 = vmax.xlane.f32.xlu0 %v870
    %v872 = vpop.xlane.xlu0 %871
    %v873 = vsub.f32 %v865, %v869
    %v874 = vsub.f32 %v866, %v872
    %v875 = vmul.f32 %v873, 1.442695
    %v876 = vpow.pop %v875
    %v877 = vmul.f32 %v874, 1.442695
    %v878 = vpow.pop %v877
    %v879 = vsel %vm449, %v876, 0.0
    %880 = vadd.xlane.f32.xlu0 %v879
    %v881 = vpop.xlane.xlu0 %880
    %v882 = vsel %vm449, %v878, 0.0
    %883 = vadd.xlane.f32.xlu0 %v882
    %v884 = vpop.xlane.xlu0 %883
    %v885 = vrcp.pop %v881
    %v886 = vrcp.pop %v884
    %v887 = vmul.f32 %v876, %v885
    %v888 = vmul.f32 %v878, %v886
    %v889 = vpack.c.bf16 %v888, %v887
    %890 = vrot.lane.b32.xlu0 %v437, 80
    %v891 = vpop.permute.xlu0 %890
    %v894 = vsel %vm449, %v889, 0
    %896 = vmatprep.subr.bf16.mxu0 0
    %897 = vmatpush1.bf16.msra.mxu0 0
    %898 = vmatprep.subr.bf16.mxu0 0
    %899 = vmatpush1.bf16.msra.mxu0 0
    %900 = vmatprep.subr.bf16.mxu0 0
    %901 = vmatpush1.bf16.msra.mxu0 0
    %902 = vmatprep.subr.bf16.mxu0 0
    %903 = vmatpush1.bf16.msra.mxu0 0
    %904 = vmatprep.subr.bf16.mxu0 0
    %905 = vmatpush1.bf16.msra.mxu0 0
    %906 = vmatprep.subr.bf16.mxu0 0
    %907 = vmatpush1.bf16.msra.mxu0 0
    %908 = vmatprep.subr.bf16.mxu0 0
    %909 = vmatpush1.bf16.msra.mxu0 0
    %910 = vmatprep.subr.bf16.mxu0 0
    %911 = vmatpush1.bf16.msra.mxu0 %v891
    %912 = vmatprep.subr.bf16.mxu0 0
    %913 = vmatpush2.bf16.msra.mxu0 0
    %914 = vmatprep.subr.bf16.mxu0 0
    %915 = vmatpush2.bf16.msra.mxu0 0
    %916 = vmatprep.subr.bf16.mxu0 0
    %917 = vmatpush2.bf16.msra.mxu0 0
    %918 = vmatprep.subr.bf16.mxu0 0
    %919 = vmatpush2.bf16.msra.mxu0 0
    %920 = vmatprep.subr.bf16.mxu0 0
    %921 = vmatpush2.bf16.msra.mxu0 0
    %922 = vmatprep.subr.bf16.mxu0 0
    %923 = vmatpush2.bf16.msra.mxu0 0
    %924 = vmatprep.subr.bf16.mxu0 0
    %925 = vmatpush2.bf16.msra.mxu0 0
    %926 = vmatprep.subr.bf16.mxu0 0
    %927 = vmatpush2.bf16.msra.mxu0 0
    %928 = vmatprep.mubr.bf16.mxu0 0
    %929 = vmatmul.mubr.bf16.gmra.mxu0 %v894
    %v930 = vpop.f32.mrf.mxu0
    %v931 = vadd.f32 0.0, %v930
    %v932 = vpop.f32.mrf.mxu0
    %v933 = vpop.f32.mrf.mxu0
    %v934 = vadd.f32 0.0, %v933
    %v935 = vpop.f32.mrf.mxu0
    %936 = vdwg.mxu0
    %939 = vrot.lane.b32.xlu0 %v685, 16
    %v940 = vpop.permute.xlu0 %939
    %941 = vrot.lane.b32.xlu0 %v688, 16
    %v942 = vpop.permute.xlu0 %941
    %947 = vrot.lane.b32.xlu0 %v808, 32
    %v948 = vpop.permute.xlu0 %947
    %949 = vrot.lane.b32.xlu0 %v811, 32
    %v950 = vpop.permute.xlu0 %949
    %955 = vrot.lane.b32.xlu0 %v931, 48
    %v956 = vpop.permute.xlu0 %955
    %957 = vrot.lane.b32.xlu0 %v934, 48
    %v958 = vpop.permute.xlu0 %957
    %v961 = vsel %vm449, %v560, %v940
    %v962 = vsel %vm449, %v563, %v942
    %vm963 = vcmask 261120
    %v964 = vsel %vm963, %v961, %v948
    %v965 = vsel %vm963, %v962, %v950
    %vm966 = vcmask 392192
    %v967 = vsel %vm966, %v964, %v956
    %v968 = vsel %vm966, %v965, %v958
    %970 = vrot.lane.b32.xlu0 %v436, 64
    %v971 = vpop.permute.xlu0 %970
    %v973 = vsel %vm449, %v434, 0
    %v976 = vsel %vm449, %v971, 0
    %978 = vmatprep.subr.bf16.mxu0 0
    %979 = vmatpush1.bf16.xpose.msra.mxu0 0
    %980 = vmatprep.subr.bf16.mxu0 0
    %981 = vmatpush1.bf16.xpose.msra.mxu0 0
    %982 = vmatprep.subr.bf16.mxu0 0
    %983 = vmatpush1.bf16.xpose.msra.mxu0 0
    %984 = vmatprep.subr.bf16.mxu0 0
    %985 = vmatpush1.bf16.xpose.msra.mxu0 0
    %986 = vmatprep.subr.bf16.mxu0 0
    %987 = vmatpush1.bf16.xpose.msra.mxu0 0
    %988 = vmatprep.subr.bf16.mxu0 0
    %989 = vmatpush1.bf16.xpose.msra.mxu0 0
    %990 = vmatprep.subr.bf16.mxu0 0
    %991 = vmatpush1.bf16.xpose.msra.mxu0 0
    %992 = vmatprep.subr.bf16.mxu0 0
    %993 = vmatpush1.bf16.xpose.msra.mxu0 %v976
    %994 = vmatprep.subr.bf16.mxu0 0
    %995 = vmatpush2.bf16.xpose.msra.mxu0 0
    %996 = vmatprep.subr.bf16.mxu0 0
    %997 = vmatpush2.bf16.xpose.msra.mxu0 0
    %998 = vmatprep.subr.bf16.mxu0 0
    %999 = vmatpush2.bf16.xpose.msra.mxu0 0
    %1000 = vmatprep.subr.bf16.mxu0 0
    %1001 = vmatpush2.bf16.xpose.msra.mxu0 0
    %1002 = vmatprep.subr.bf16.mxu0 0
    %1003 = vmatpush2.bf16.xpose.msra.mxu0 0
    %1004 = vmatprep.subr.bf16.mxu0 0
    %1005 = vmatpush2.bf16.xpose.msra.mxu0 0
    %1006 = vmatprep.subr.bf16.mxu0 0
    %1007 = vmatpush2.bf16.xpose.msra.mxu0 0
    %1008 = vmatprep.subr.bf16.mxu0 0
    %1009 = vmatpush2.bf16.xpose.msra.mxu0 0
    %1010 = vmatprep.mubr.bf16.mxu0 0
    %1011 = vmatmul.mubr.bf16.gmra.mxu0 %v973
    %v1012 = vpop.f32.mrf.mxu0
    %v1013 = vadd.f32 0.0, %v1012
    %v1014 = vpop.f32.mrf.mxu0
    %v1015 = vpop.f32.mrf.mxu0
    %v1016 = vadd.f32 0.0, %v1015
    %v1017 = vpop.f32.mrf.mxu0
    %1018 = vdwg.mxu0
    %v1019 = vsel %vm444, %v1013, -1e+09
    %v1020 = vsel %vm445, %v1016, -1e+09
    %v1021 = vsel %vm449, %v1019, -inf
    %1022 = vmax.xlane.f32.xlu0 %v1021
    %v1023 = vpop.xlane.xlu0 %1022
    %v1024 = vsel %vm449, %v1020, -inf
    %1025 = vmax.xlane.f32.xlu0 %v1024
    %v1026 = vpop.xlane.xlu0 %1025
    %v1027 = vsub.f32 %v1019, %v1023
    %v1028 = vsub.f32 %v1020, %v1026
    %v1029 = vmul.f32 %v1027, 1.442695
    %v1030 = vpow.pop %v1029
    %v1031 = vmul.f32 %v1028, 1.442695
    %v1032 = vpow.pop %v1031
    %v1033 = vsel %vm449, %v1030, 0.0
    %1034 = vadd.xlane.f32.xlu0 %v1033
    %v1035 = vpop.xlane.xlu0 %1034
    %v1036 = vsel %vm449, %v1032, 0.0
    %1037 = vadd.xlane.f32.xlu0 %v1036
    %v1038 = vpop.xlane.xlu0 %1037
    %v1039 = vrcp.pop %v1035
    %v1040 = vrcp.pop %v1038
    %v1041 = vmul.f32 %v1030, %v1039
    %v1042 = vmul.f32 %v1032, %v1040
    %v1043 = vpack.c.bf16 %v1042, %v1041
    %v1045 = vsel %vm449, %v1043, 0
    %1047 = vmatprep.subr.bf16.mxu0 0
    %1048 = vmatpush1.bf16.msra.mxu0 0
    %1049 = vmatprep.subr.bf16.mxu0 0
    %1050 = vmatpush1.bf16.msra.mxu0 0
    %1051 = vmatprep.subr.bf16.mxu0 0
    %1052 = vmatpush1.bf16.msra.mxu0 0
    %1053 = vmatprep.subr.bf16.mxu0 0
    %1054 = vmatpush1.bf16.msra.mxu0 0
    %1055 = vmatprep.subr.bf16.mxu0 0
    %1056 = vmatpush1.bf16.msra.mxu0 0
    %1057 = vmatprep.subr.bf16.mxu0 0
    %1058 = vmatpush1.bf16.msra.mxu0 0
    %1059 = vmatprep.subr.bf16.mxu0 0
    %1060 = vmatpush1.bf16.msra.mxu0 0
    %1061 = vmatprep.subr.bf16.mxu0 0
    %1062 = vmatpush1.bf16.msra.mxu0 %v438
    %1063 = vmatprep.subr.bf16.mxu0 0
    %1064 = vmatpush2.bf16.msra.mxu0 0
    %1065 = vmatprep.subr.bf16.mxu0 0
    %1066 = vmatpush2.bf16.msra.mxu0 0
    %1067 = vmatprep.subr.bf16.mxu0 0
    %1068 = vmatpush2.bf16.msra.mxu0 0
    %1069 = vmatprep.subr.bf16.mxu0 0
    %1070 = vmatpush2.bf16.msra.mxu0 0
    %1071 = vmatprep.subr.bf16.mxu0 0
    %1072 = vmatpush2.bf16.msra.mxu0 0
    %1073 = vmatprep.subr.bf16.mxu0 0
    %1074 = vmatpush2.bf16.msra.mxu0 0
    %1075 = vmatprep.subr.bf16.mxu0 0
    %1076 = vmatpush2.bf16.msra.mxu0 0
    %1077 = vmatprep.subr.bf16.mxu0 0
    %1078 = vmatpush2.bf16.msra.mxu0 0
    %1079 = vmatprep.mubr.bf16.mxu0 0
    %1080 = vmatmul.mubr.bf16.gmra.mxu0 %v1045
    %v1081 = vpop.f32.mrf.mxu0
    %v1082 = vadd.f32 0.0, %v1081
    %v1083 = vpop.f32.mrf.mxu0
    %v1084 = vpop.f32.mrf.mxu0
    %v1085 = vadd.f32 0.0, %v1084
    %v1086 = vpop.f32.mrf.mxu0
    %1087 = vdwg.mxu0
    %1089 = vrot.lane.b32.xlu0 %v434, 112
    %v1090 = vpop.permute.xlu0 %1089
    %1091 = vrot.lane.b32.xlu0 %v436, 48
    %v1092 = vpop.permute.xlu0 %1091
    %v1094 = vsel %vm449, %v1090, 0
    %v1097 = vsel %vm449, %v1092, 0
    %1099 = vmatprep.subr.bf16.mxu0 0
    %1100 = vmatpush1.bf16.xpose.msra.mxu0 0
    %1101 = vmatprep.subr.bf16.mxu0 0
    %1102 = vmatpush1.bf16.xpose.msra.mxu0 0
    %1103 = vmatprep.subr.bf16.mxu0 0
    %1104 = vmatpush1.bf16.xpose.msra.mxu0 0
    %1105 = vmatprep.subr.bf16.mxu0 0
    %1106 = vmatpush1.bf16.xpose.msra.mxu0 0
    %1107 = vmatprep.subr.bf16.mxu0 0
    %1108 = vmatpush1.bf16.xpose.msra.mxu0 0
    %1109 = vmatprep.subr.bf16.mxu0 0
    %1110 = vmatpush1.bf16.xpose.msra.mxu0 0
    %1111 = vmatprep.subr.bf16.mxu0 0
    %1112 = vmatpush1.bf16.xpose.msra.mxu0 0
    %1113 = vmatprep.subr.bf16.mxu0 0
    %1114 = vmatpush1.bf16.xpose.msra.mxu0 %v1097
    %1115 = vmatprep.subr.bf16.mxu0 0
    %1116 = vmatpush2.bf16.xpose.msra.mxu0 0
    %1117 = vmatprep.subr.bf16.mxu0 0
    %1118 = vmatpush2.bf16.xpose.msra.mxu0 0
    %1119 = vmatprep.subr.bf16.mxu0 0
    %1120 = vmatpush2.bf16.xpose.msra.mxu0 0
    %1121 = vmatprep.subr.bf16.mxu0 0
    %1122 = vmatpush2.bf16.xpose.msra.mxu0 0
    %1123 = vmatprep.subr.bf16.mxu0 0
    %1124 = vmatpush2.bf16.xpose.msra.mxu0 0
    %1125 = vmatprep.subr.bf16.mxu0 0
    %1126 = vmatpush2.bf16.xpose.msra.mxu0 0
    %1127 = vmatprep.subr.bf16.mxu0 0
    %1128 = vmatpush2.bf16.xpose.msra.mxu0 0
    %1129 = vmatprep.subr.bf16.mxu0 0
    %1130 = vmatpush2.bf16.xpose.msra.mxu0 0
    %1131 = vmatprep.mubr.bf16.mxu0 0
    %1132 = vmatmul.mubr.bf16.gmra.mxu0 %v1094
    %v1133 = vpop.f32.mrf.mxu0
    %v1134 = vadd.f32 0.0, %v1133
    %v1135 = vpop.f32.mrf.mxu0
    %v1136 = vpop.f32.mrf.mxu0
    %v1137 = vadd.f32 0.0, %v1136
    %v1138 = vpop.f32.mrf.mxu0
    %1139 = vdwg.mxu0
    %v1140 = vsel %vm444, %v1134, -1e+09
    %v1141 = vsel %vm445, %v1137, -1e+09
    %v1142 = vsel %vm449, %v1140, -inf
    %1143 = vmax.xlane.f32.xlu0 %v1142
    %v1144 = vpop.xlane.xlu0 %1143
    %v1145 = vsel %vm449, %v1141, -inf
    %1146 = vmax.xlane.f32.xlu0 %v1145
    %v1147 = vpop.xlane.xlu0 %1146
    %v1148 = vsub.f32 %v1140, %v1144
    %v1149 = vsub.f32 %v1141, %v1147
    %v1150 = vmul.f32 %v1148, 1.442695
    %v1151 = vpow.pop %v1150
    %v1152 = vmul.f32 %v1149, 1.442695
    %v1153 = vpow.pop %v1152
    %v1154 = vsel %vm449, %v1151, 0.0
    %1155 = vadd.xlane.f32.xlu0 %v1154
    %v1156 = vpop.xlane.xlu0 %1155
    %v1157 = vsel %vm449, %v1153, 0.0
    %1158 = vadd.xlane.f32.xlu0 %v1157
    %v1159 = vpop.xlane.xlu0 %1158
    %v1160 = vrcp.pop %v1156
    %v1161 = vrcp.pop %v1159
    %v1162 = vmul.f32 %v1151, %v1160
    %v1163 = vmul.f32 %v1153, %v1161
    %v1164 = vpack.c.bf16 %v1163, %v1162
    %1166 = vrot.lane.b32.xlu0 %v438, 112
    %v1167 = vpop.permute.xlu0 %1166
    %v1170 = vsel %vm449, %v1164, 0
    %1172 = vmatprep.subr.bf16.mxu0 0
    %1173 = vmatpush1.bf16.msra.mxu0 0
    %1174 = vmatprep.subr.bf16.mxu0 0
    %1175 = vmatpush1.bf16.msra.mxu0 0
    %1176 = vmatprep.subr.bf16.mxu0 0
    %1177 = vmatpush1.bf16.msra.mxu0 0
    %1178 = vmatprep.subr.bf16.mxu0 0
    %1179 = vmatpush1.bf16.msra.mxu0 0
    %1180 = vmatprep.subr.bf16.mxu0 0
    %1181 = vmatpush1.bf16.msra.mxu0 0
    %1182 = vmatprep.subr.bf16.mxu0 0
    %1183 = vmatpush1.bf16.msra.mxu0 0
    %1184 = vmatprep.subr.bf16.mxu0 0
    %1185 = vmatpush1.bf16.msra.mxu0 0
    %1186 = vmatprep.subr.bf16.mxu0 0
    %1187 = vmatpush1.bf16.msra.mxu0 %v1167
    %1188 = vmatprep.subr.bf16.mxu0 0
    %1189 = vmatpush2.bf16.msra.mxu0 0
    %1190 = vmatprep.subr.bf16.mxu0 0
    %1191 = vmatpush2.bf16.msra.mxu0 0
    %1192 = vmatprep.subr.bf16.mxu0 0
    %1193 = vmatpush2.bf16.msra.mxu0 0
    %1194 = vmatprep.subr.bf16.mxu0 0
    %1195 = vmatpush2.bf16.msra.mxu0 0
    %1196 = vmatprep.subr.bf16.mxu0 0
    %1197 = vmatpush2.bf16.msra.mxu0 0
    %1198 = vmatprep.subr.bf16.mxu0 0
    %1199 = vmatpush2.bf16.msra.mxu0 0
    %1200 = vmatprep.subr.bf16.mxu0 0
    %1201 = vmatpush2.bf16.msra.mxu0 0
    %1202 = vmatprep.subr.bf16.mxu0 0
    %1203 = vmatpush2.bf16.msra.mxu0 0
    %1204 = vmatprep.mubr.bf16.mxu0 0
    %1205 = vmatmul.mubr.bf16.gmra.mxu0 %v1170
    %v1206 = vpop.f32.mrf.mxu0
    %v1207 = vadd.f32 0.0, %v1206
    %v1208 = vpop.f32.mrf.mxu0
    %v1209 = vpop.f32.mrf.mxu0
    %v1210 = vadd.f32 0.0, %v1209
    %v1211 = vpop.f32.mrf.mxu0
    %1212 = vdwg.mxu0
    %1213 = vrot.lane.b32.xlu0 %v434, 96
    %v1214 = vpop.permute.xlu0 %1213
    %1215 = vrot.lane.b32.xlu0 %v436, 32
    %v1216 = vpop.permute.xlu0 %1215
    %v1218 = vsel %vm449, %v1214, 0
    %v1221 = vsel %vm449, %v1216, 0
    %1223 = vmatprep.subr.bf16.mxu0 0
    %1224 = vmatpush1.bf16.xpose.msra.mxu0 0
    %1225 = vmatprep.subr.bf16.mxu0 0
    %1226 = vmatpush1.bf16.xpose.msra.mxu0 0
    %1227 = vmatprep.subr.bf16.mxu0 0
    %1228 = vmatpush1.bf16.xpose.msra.mxu0 0
    %1229 = vmatprep.subr.bf16.mxu0 0
    %1230 = vmatpush1.bf16.xpose.msra.mxu0 0
    %1231 = vmatprep.subr.bf16.mxu0 0
    %1232 = vmatpush1.bf16.xpose.msra.mxu0 0
    %1233 = vmatprep.subr.bf16.mxu0 0
    %1234 = vmatpush1.bf16.xpose.msra.mxu0 0
    %1235 = vmatprep.subr.bf16.mxu0 0
    %1236 = vmatpush1.bf16.xpose.msra.mxu0 0
    %1237 = vmatprep.subr.bf16.mxu0 0
    %1238 = vmatpush1.bf16.xpose.msra.mxu0 %v1221
    %1239 = vmatprep.subr.bf16.mxu0 0
    %1240 = vmatpush2.bf16.xpose.msra.mxu0 0
    %1241 = vmatprep.subr.bf16.mxu0 0
    %1242 = vmatpush2.bf16.xpose.msra.mxu0 0
    %1243 = vmatprep.subr.bf16.mxu0 0
    %1244 = vmatpush2.bf16.xpose.msra.mxu0 0
    %1245 = vmatprep.subr.bf16.mxu0 0
    %1246 = vmatpush2.bf16.xpose.msra.mxu0 0
    %1247 = vmatprep.subr.bf16.mxu0 0
    %1248 = vmatpush2.bf16.xpose.msra.mxu0 0
    %1249 = vmatprep.subr.bf16.mxu0 0
    %1250 = vmatpush2.bf16.xpose.msra.mxu0 0
    %1251 = vmatprep.subr.bf16.mxu0 0
    %1252 = vmatpush2.bf16.xpose.msra.mxu0 0
    %1253 = vmatprep.subr.bf16.mxu0 0
    %1254 = vmatpush2.bf16.xpose.msra.mxu0 0
    %1255 = vmatprep.mubr.bf16.mxu0 0
    %1256 = vmatmul.mubr.bf16.gmra.mxu0 %v1218
    %v1257 = vpop.f32.mrf.mxu0
    %v1258 = vadd.f32 0.0, %v1257
    %v1259 = vpop.f32.mrf.mxu0
    %v1260 = vpop.f32.mrf.mxu0
    %v1261 = vadd.f32 0.0, %v1260
    %v1262 = vpop.f32.mrf.mxu0
    %1263 = vdwg.mxu0
    %v1264 = vsel %vm444, %v1258, -1e+09
    %v1265 = vsel %vm445, %v1261, -1e+09
    %v1266 = vsel %vm449, %v1264, -inf
    %1267 = vmax.xlane.f32.xlu0 %v1266
    %v1268 = vpop.xlane.xlu0 %1267
    %v1269 = vsel %vm449, %v1265, -inf
    %1270 = vmax.xlane.f32.xlu0 %v1269
    %v1271 = vpop.xlane.xlu0 %1270
    %v1272 = vsub.f32 %v1264, %v1268
    %v1273 = vsub.f32 %v1265, %v1271
    %v1274 = vmul.f32 %v1272, 1.442695
    %v1275 = vpow.pop %v1274
    %v1276 = vmul.f32 %v1273, 1.442695
    %v1277 = vpow.pop %v1276
    %v1278 = vsel %vm449, %v1275, 0.0
    %1279 = vadd.xlane.f32.xlu0 %v1278
    %v1280 = vpop.xlane.xlu0 %1279
    %v1281 = vsel %vm449, %v1277, 0.0
    %1282 = vadd.xlane.f32.xlu0 %v1281
    %v1283 = vpop.xlane.xlu0 %1282
    %v1284 = vrcp.pop %v1280
    %v1285 = vrcp.pop %v1283
    %v1286 = vmul.f32 %v1275, %v1284
    %v1287 = vmul.f32 %v1277, %v1285
    %v1288 = vpack.c.bf16 %v1287, %v1286
    %1289 = vrot.lane.b32.xlu0 %v438, 96
    %v1290 = vpop.permute.xlu0 %1289
    %v1293 = vsel %vm449, %v1288, 0
    %1295 = vmatprep.subr.bf16.mxu0 0
    %1296 = vmatpush1.bf16.msra.mxu0 0
    %1297 = vmatprep.subr.bf16.mxu0 0
    %1298 = vmatpush1.bf16.msra.mxu0 0
    %1299 = vmatprep.subr.bf16.mxu0 0
    %1300 = vmatpush1.bf16.msra.mxu0 0
    %1301 = vmatprep.subr.bf16.mxu0 0
    %1302 = vmatpush1.bf16.msra.mxu0 0
    %1303 = vmatprep.subr.bf16.mxu0 0
    %1304 = vmatpush1.bf16.msra.mxu0 0
    %1305 = vmatprep.subr.bf16.mxu0 0
    %1306 = vmatpush1.bf16.msra.mxu0 0
    %1307 = vmatprep.subr.bf16.mxu0 0
    %1308 = vmatpush1.bf16.msra.mxu0 0
    %1309 = vmatprep.subr.bf16.mxu0 0
    %1310 = vmatpush1.bf16.msra.mxu0 %v1290
    %1311 = vmatprep.subr.bf16.mxu0 0
    %1312 = vmatpush2.bf16.msra.mxu0 0
    %1313 = vmatprep.subr.bf16.mxu0 0
    %1314 = vmatpush2.bf16.msra.mxu0 0
    %1315 = vmatprep.subr.bf16.mxu0 0
    %1316 = vmatpush2.bf16.msra.mxu0 0
    %1317 = vmatprep.subr.bf16.mxu0 0
    %1318 = vmatpush2.bf16.msra.mxu0 0
    %1319 = vmatprep.subr.bf16.mxu0 0
    %1320 = vmatpush2.bf16.msra.mxu0 0
    %1321 = vmatprep.subr.bf16.mxu0 0
    %1322 = vmatpush2.bf16.msra.mxu0 0
    %1323 = vmatprep.subr.bf16.mxu0 0
    %1324 = vmatpush2.bf16.msra.mxu0 0
    %1325 = vmatprep.subr.bf16.mxu0 0
    %1326 = vmatpush2.bf16.msra.mxu0 0
    %1327 = vmatprep.mubr.bf16.mxu0 0
    %1328 = vmatmul.mubr.bf16.gmra.mxu0 %v1293
    %v1329 = vpop.f32.mrf.mxu0
    %v1330 = vadd.f32 0.0, %v1329
    %v1331 = vpop.f32.mrf.mxu0
    %v1332 = vpop.f32.mrf.mxu0
    %v1333 = vadd.f32 0.0, %v1332
    %v1334 = vpop.f32.mrf.mxu0
    %1335 = vdwg.mxu0
    %1336 = vrot.lane.b32.xlu0 %v434, 80
    %v1337 = vpop.permute.xlu0 %1336
    %1338 = vrot.lane.b32.xlu0 %v436, 16
    %v1339 = vpop.permute.xlu0 %1338
    %v1341 = vsel %vm449, %v1337, 0
    %v1344 = vsel %vm449, %v1339, 0
    %1346 = vmatprep.subr.bf16.mxu0 0
    %1347 = vmatpush1.bf16.xpose.msra.mxu0 0
    %1348 = vmatprep.subr.bf16.mxu0 0
    %1349 = vmatpush1.bf16.xpose.msra.mxu0 0
    %1350 = vmatprep.subr.bf16.mxu0 0
    %1351 = vmatpush1.bf16.xpose.msra.mxu0 0
    %1352 = vmatprep.subr.bf16.mxu0 0
    %1353 = vmatpush1.bf16.xpose.msra.mxu0 0
    %1354 = vmatprep.subr.bf16.mxu0 0
    %1355 = vmatpush1.bf16.xpose.msra.mxu0 0
    %1356 = vmatprep.subr.bf16.mxu0 0
    %1357 = vmatpush1.bf16.xpose.msra.mxu0 0
    %1358 = vmatprep.subr.bf16.mxu0 0
    %1359 = vmatpush1.bf16.xpose.msra.mxu0 0
    %1360 = vmatprep.subr.bf16.mxu0 0
    %1361 = vmatpush1.bf16.xpose.msra.mxu0 %v1344
    %1362 = vmatprep.subr.bf16.mxu0 0
    %1363 = vmatpush2.bf16.xpose.msra.mxu0 0
    %1364 = vmatprep.subr.bf16.mxu0 0
    %1365 = vmatpush2.bf16.xpose.msra.mxu0 0
    %1366 = vmatprep.subr.bf16.mxu0 0
    %1367 = vmatpush2.bf16.xpose.msra.mxu0 0
    %1368 = vmatprep.subr.bf16.mxu0 0
    %1369 = vmatpush2.bf16.xpose.msra.mxu0 0
    %1370 = vmatprep.subr.bf16.mxu0 0
    %1371 = vmatpush2.bf16.xpose.msra.mxu0 0
    %1372 = vmatprep.subr.bf16.mxu0 0
    %1373 = vmatpush2.bf16.xpose.msra.mxu0 0
    %1374 = vmatprep.subr.bf16.mxu0 0
    %1375 = vmatpush2.bf16.xpose.msra.mxu0 0
    %1376 = vmatprep.subr.bf16.mxu0 0
    %1377 = vmatpush2.bf16.xpose.msra.mxu0 0
    %1378 = vmatprep.mubr.bf16.mxu0 0
    %1379 = vmatmul.mubr.bf16.gmra.mxu0 %v1341
    %v1380 = vpop.f32.mrf.mxu0
    %v1381 = vadd.f32 0.0, %v1380
    %v1382 = vpop.f32.mrf.mxu0
    %v1383 = vpop.f32.mrf.mxu0
    %v1384 = vadd.f32 0.0, %v1383
    %v1385 = vpop.f32.mrf.mxu0
    %1386 = vdwg.mxu0
    %v1387 = vsel %vm444, %v1381, -1e+09
    %v1388 = vsel %vm445, %v1384, -1e+09
    %v1389 = vsel %vm449, %v1387, -inf
    %1390 = vmax.xlane.f32.xlu0 %v1389
    %v1391 = vpop.xlane.xlu0 %1390
    %v1392 = vsel %vm449, %v1388, -inf
    %1393 = vmax.xlane.f32.xlu0 %v1392
    %v1394 = vpop.xlane.xlu0 %1393
    %v1395 = vsub.f32 %v1387, %v1391
    %v1396 = vsub.f32 %v1388, %v1394
    %v1397 = vmul.f32 %v1395, 1.442695
    %v1398 = vpow.pop %v1397
    %v1399 = vmul.f32 %v1396, 1.442695
    %v1400 = vpow.pop %v1399
    %v1401 = vsel %vm449, %v1398, 0.0
    %1402 = vadd.xlane.f32.xlu0 %v1401
    %v1403 = vpop.xlane.xlu0 %1402
    %v1404 = vsel %vm449, %v1400, 0.0
    %1405 = vadd.xlane.f32.xlu0 %v1404
    %v1406 = vpop.xlane.xlu0 %1405
    %v1407 = vrcp.pop %v1403
    %v1408 = vrcp.pop %v1406
    %v1409 = vmul.f32 %v1398, %v1407
    %v1410 = vmul.f32 %v1400, %v1408
    %v1411 = vpack.c.bf16 %v1410, %v1409
    %1412 = vrot.lane.b32.xlu0 %v438, 80
    %v1413 = vpop.permute.xlu0 %1412
    %v1416 = vsel %vm449, %v1411, 0
    %1418 = vmatprep.subr.bf16.mxu0 0
    %1419 = vmatpush1.bf16.msra.mxu0 0
    %1420 = vmatprep.subr.bf16.mxu0 0
    %1421 = vmatpush1.bf16.msra.mxu0 0
    %1422 = vmatprep.subr.bf16.mxu0 0
    %1423 = vmatpush1.bf16.msra.mxu0 0
    %1424 = vmatprep.subr.bf16.mxu0 0
    %1425 = vmatpush1.bf16.msra.mxu0 0
    %1426 = vmatprep.subr.bf16.mxu0 0
    %1427 = vmatpush1.bf16.msra.mxu0 0
    %1428 = vmatprep.subr.bf16.mxu0 0
    %1429 = vmatpush1.bf16.msra.mxu0 0
    %1430 = vmatprep.subr.bf16.mxu0 0
    %1431 = vmatpush1.bf16.msra.mxu0 0
    %1432 = vmatprep.subr.bf16.mxu0 0
    %1433 = vmatpush1.bf16.msra.mxu0 %v1413
    %1434 = vmatprep.subr.bf16.mxu0 0
    %1435 = vmatpush2.bf16.msra.mxu0 0
    %1436 = vmatprep.subr.bf16.mxu0 0
    %1437 = vmatpush2.bf16.msra.mxu0 0
    %1438 = vmatprep.subr.bf16.mxu0 0
    %1439 = vmatpush2.bf16.msra.mxu0 0
    %1440 = vmatprep.subr.bf16.mxu0 0
    %1441 = vmatpush2.bf16.msra.mxu0 0
    %1442 = vmatprep.subr.bf16.mxu0 0
    %1443 = vmatpush2.bf16.msra.mxu0 0
    %1444 = vmatprep.subr.bf16.mxu0 0
    %1445 = vmatpush2.bf16.msra.mxu0 0
    %1446 = vmatprep.subr.bf16.mxu0 0
    %1447 = vmatpush2.bf16.msra.mxu0 0
    %1448 = vmatprep.subr.bf16.mxu0 0
    %1449 = vmatpush2.bf16.msra.mxu0 0
    %1450 = vmatprep.mubr.bf16.mxu0 0
    %1451 = vmatmul.mubr.bf16.gmra.mxu0 %v1416
    %v1452 = vpop.f32.mrf.mxu0
    %v1453 = vadd.f32 0.0, %v1452
    %v1454 = vpop.f32.mrf.mxu0
    %v1455 = vpop.f32.mrf.mxu0
    %v1456 = vadd.f32 0.0, %v1455
    %v1457 = vpop.f32.mrf.mxu0
    %1458 = vdwg.mxu0
    %1461 = vrot.lane.b32.xlu0 %v1207, 16
    %v1462 = vpop.permute.xlu0 %1461
    %1463 = vrot.lane.b32.xlu0 %v1210, 16
    %v1464 = vpop.permute.xlu0 %1463
    %1469 = vrot.lane.b32.xlu0 %v1330, 32
    %v1470 = vpop.permute.xlu0 %1469
    %1471 = vrot.lane.b32.xlu0 %v1333, 32
    %v1472 = vpop.permute.xlu0 %1471
    %1477 = vrot.lane.b32.xlu0 %v1453, 48
    %v1478 = vpop.permute.xlu0 %1477
    %1479 = vrot.lane.b32.xlu0 %v1456, 48
    %v1480 = vpop.permute.xlu0 %1479
    %v1483 = vsel %vm449, %v1082, %v1462
    %v1484 = vsel %vm449, %v1085, %v1464
    %v1485 = vsel %vm963, %v1483, %v1470
    %v1486 = vsel %vm963, %v1484, %v1472
    %v1487 = vsel %vm966, %v1485, %v1478
    %v1488 = vsel %vm966, %v1486, %v1480
    %v1489 = vpack.c.bf16 %v968, %v967
    %v1490 = vpack.c.bf16 %v1488, %v1487
    %v1491 = vld [vmem:[%s2] sm:$0xf]
    %v1492 = vld [vmem:[%s2 + $0x4] sm:$0xf]
    %v1493 = vld [vmem:[%s2 + $0x8] sm:$0xf]
    %v1494 = vld [vmem:[%s2 + $0xc] sm:$0xf]
    %v1495 = vld [vmem:[%s2 + $0x10] sm:$0xf]
    %v1496 = vld [vmem:[%s2 + $0x14] sm:$0xf]
    %v1497 = vld [vmem:[%s2 + $0x18] sm:$0xf]
    %v1498 = vld [vmem:[%s2 + $0x1c] sm:$0xf]
    %v1507 = vunpack.c.l.b16 %v1491
    %v1508 = vunpack.c.l.b16 %v1492
    %v1509 = vunpack.c.l.b16 %v1493
    %v1510 = vunpack.c.l.b16 %v1494
    %v1511 = vunpack.c.l.b16 %v1495
    %v1512 = vunpack.c.l.b16 %v1496
    %v1513 = vunpack.c.l.b16 %v1497
    %v1514 = vunpack.c.l.b16 %v1498
    %v1515 = vpack.c.b16 %v1508, %v1507
    %v1516 = vpack.c.b16 %v1510, %v1509
    %v1517 = vpack.c.b16 %v1512, %v1511
    %v1518 = vpack.c.b16 %v1514, %v1513
    %v1520 = vsel %vm168, %v1489, 0
    %v1523 = vsel %vm168, %v1490, 0
    %v1526 = vsel %vm168, %v1515, 0
    %v1529 = vsel %vm168, %v1516, 0
    %v1532 = vsel %vm168, %v1517, 0
    %v1535 = vsel %vm168, %v1518, 0
    %1537 = vmatprep.subr.bf16.mxu0 0
    %1538 = vmatpush1.bf16.xpose.msra.mxu0 0
    %1539 = vmatprep.subr.bf16.mxu0 0
    %1540 = vmatpush1.bf16.xpose.msra.mxu0 0
    %1541 = vmatprep.subr.bf16.mxu0 0
    %1542 = vmatpush1.bf16.xpose.msra.mxu0 0
    %1543 = vmatprep.subr.bf16.mxu0 0
    %1544 = vmatpush1.bf16.xpose.msra.mxu0 0
    %1545 = vmatprep.subr.bf16.mxu0 0
    %1546 = vmatpush1.bf16.xpose.msra.mxu0 %v1535
    %1547 = vmatprep.subr.bf16.mxu0 0
    %1548 = vmatpush1.bf16.xpose.msra.mxu0 %v1532
    %1549 = vmatprep.subr.bf16.mxu0 0
    %1550 = vmatpush1.bf16.xpose.msra.mxu0 %v1529
    %1551 = vmatprep.subr.bf16.mxu0 0
    %1552 = vmatpush1.bf16.xpose.msra.mxu0 %v1526
    %1553 = vmatprep.subr.bf16.mxu0 0
    %1554 = vmatpush2.bf16.xpose.msra.mxu0 0
    %1555 = vmatprep.subr.bf16.mxu0 0
    %1556 = vmatpush2.bf16.xpose.msra.mxu0 0
    %1557 = vmatprep.subr.bf16.mxu0 0
    %1558 = vmatpush2.bf16.xpose.msra.mxu0 0
    %1559 = vmatprep.subr.bf16.mxu0 0
    %1560 = vmatpush2.bf16.xpose.msra.mxu0 0
    %1561 = vmatprep.subr.bf16.mxu0 0
    %1562 = vmatpush2.bf16.xpose.msra.mxu0 0
    %1563 = vmatprep.subr.bf16.mxu0 0
    %1564 = vmatpush2.bf16.xpose.msra.mxu0 0
    %1565 = vmatprep.subr.bf16.mxu0 0
    %1566 = vmatpush2.bf16.xpose.msra.mxu0 0
    %1567 = vmatprep.subr.bf16.mxu0 0
    %1568 = vmatpush2.bf16.xpose.msra.mxu0 0
    %1569 = vmatprep.mubr.bf16.mxu0 0
    %1570 = vmatmul.mubr.bf16.gmra.mxu0 %v1520
    %v1571 = vpop.f32.mrf.mxu0
    %v1572 = vadd.f32 0.0, %v1571
    %v1573 = vpop.f32.mrf.mxu0
    %v1574 = vpop.f32.mrf.mxu0
    %v1575 = vadd.f32 0.0, %v1574
    %v1576 = vpop.f32.mrf.mxu0
    %1577 = vmatprep.mubr.bf16.mxu0 0
    %1578 = vmatmul.mubr.bf16.gmra.mxu0 %v1523
    %v1579 = vpop.f32.mrf.mxu0
    %v1580 = vadd.f32 0.0, %v1579
    %v1581 = vpop.f32.mrf.mxu0
    %v1582 = vpop.f32.mrf.mxu0
    %v1583 = vadd.f32 0.0, %v1582
    %v1584 = vpop.f32.mrf.mxu0
    %1585 = vdwg.mxu0
    %1586 = vst.msk [vmem:[#allocation2] sm:$0xff] %vm168, %v1572
    %1587 = vst.msk [vmem:[#allocation2 + $0x8] sm:$0xff] %vm168, %v1575
    %1588 = vst.msk [vmem:[#allocation2 + $0x10] sm:$0xff] %vm168, %v1580
    %1589 = vst.msk [vmem:[#allocation2 + $0x18] sm:$0xff] %vm168, %v1583
    // Predicated region
    $region22: #{tpu_custom_call.1} parent=1 // pred_check
      _
    $region23: #{tpu_custom_call.1} parent=1 // pred_check_branch
      %1591 = sbr.rel (0) target = $region25
    $region24: #{tpu_custom_call.1} parent=1 // pred_region
      %s1593 = ssub.s32 512, 512
      %1594 = vsyncadd [#allocation3], %s1593
      %s1595 = sshll.u32 [#allocation2], 4
      %s1596 = int_to_ptr.vmem [resolvable:$true] %s1595
      %1601 = dma.vmem_to_hbm [thread:$0]  %s1596, 512, %s5, [#allocation3], 128, 128, 8
    $region25: #{tpu_custom_call.1} parent=1 // pred_fallthru
      _
    // Predicated region
    $region26: #{tpu_custom_call.1} parent=1 // pred_check
      _
    $region27: #{tpu_custom_call.1} parent=1 // pred_check_branch
      %1603 = sbr.rel (0) target = $region29
    $region28: #{tpu_custom_call.1} parent=1 // pred_region
      %1604 = dma.done [#allocation3], 512
    $region29: #{tpu_custom_call.1} parent=1 // pred_fallthru
      _
    %1605 = vsyncpa [#allocation3], 1

</llo_original>
